<compile_context>
chip_gen: v7x
topology: tpu7x:2x2x1
jax: 0.10.0
libtpu: 0.0.40
codegen_flags: <defaults>
</compile_context>

<pallas_src>
import math

import jax
import jax.numpy as jnp
from jax.experimental import pallas as pl
from jax.experimental.pallas import tpu as pltpu


# -----------------------------------------------------------------------------
# Fused Pallas kernel: standardize + forward-diffuse + both prediction heads,
# whole batch in one invocation.
# -----------------------------------------------------------------------------
def fused_forward_kernel(
    xu_ref,      # (Bp, P)     raw UDF channel x[..., 0]
    xc_ref,      # (Bp, Ck)    raw gathered contact params (K padded 288->384, zeros)
    eu_ref,      # (Bp, P)     gaussian noise for UDF
    ec_ref,      # (Bp, Ck)    gaussian noise for contacts (zero-padded)
    te_ref,      # (Bp, T)     sinusoidal time embedding
    rs_ref,      # (Bp, 4)     per-row scales [sa/std_u, -sa*mean_u/std_u, sa, s1a]
    cmean_ref,   # (1, Ck)     tiled contacts mean (zero-padded)
    crstd_ref,   # (1, Ck)     tiled contacts 1/std (zero-padded)
    wux_ref,     # (P, P)      bf16 head weight: diffused UDF      -> eps_hat_udf
    wcx_ref,     # (Ck, Np)    bf16 head weight: diffused contacts -> eps_hat_con
    wt_ref,      # (T, P+Np)   bf16 merged time-emb weight (UDF | contacts)
    bu_ref,      # (1, P)      f32 bias
    bc_ref,      # (1, Np)     f32 bias (zero-padded beyond 288)
    ohu_ref,     # (Bp, P)     eps_hat_udf
    ohc_ref,     # (Bp, Np)    eps_hat_contacts (padded)
):
    P = ohu_ref.shape[-1]

    rs = rs_ref[...]                      # (Bp, 4)
    a_u = rs[:, 0:1]                      # sqrt(alpha) / udf_std
    c_u = rs[:, 1:2]                      # -sqrt(alpha) * udf_mean / udf_std
    sa = rs[:, 2:3]                       # sqrt(alpha)
    s1a = rs[:, 3:4]                      # sqrt(1 - alpha)

    # ---- standardization + forward diffusion q(x_t | x_0), full-batch slabs ----
    # NOTE: standardized x is never consumed elsewhere in forward(), so it is
    # never written back to HBM (torch mutates x in place but never reads it).
    du = a_u * xu_ref[...] + c_u + s1a * eu_ref[...]                     # (Bp, P)
    c_std = (xc_ref[...] - cmean_ref[...]) * crstd_ref[...]              # (Bp, Ck)
    dc = sa * c_std + s1a * ec_ref[...]                                  # (Bp, Ck)

    # ---- surrogate backbone heads (MXU, bf16 inputs / f32 accumulation) ----
    # TODO(synk): real ContactUNetBackboneModel (3D UNet) unavailable; linear
    # surrogate heads keep the forward interface intact.
    te = te_ref[...].astype(jnp.bfloat16)                                # (Bp, T)
    t_out = jnp.dot(te, wt_ref[...], preferred_element_type=jnp.float32)  # (Bp, P+Np)

    ohu_ref[...] = (
        jnp.dot(du.astype(jnp.bfloat16), wux_ref[...],
                preferred_element_type=jnp.float32)
        + t_out[:, :P] + bu_ref[...]
    )
    ohc_ref[...] = (
        jnp.dot(dc.astype(jnp.bfloat16), wcx_ref[...],
                preferred_element_type=jnp.float32)
        + t_out[:, P:] + bc_ref[...]
    )


def fused_forward(xu, xc, eu, ec, te, row_scales, cmean, crstd,
                  w_ux, w_cx, w_t, b_u, b_c):
    Bp, P = xu.shape
    Ck = xc.shape[-1]
    T = te.shape[-1]
    Np = w_cx.shape[-1]

    operands = (xu, xc, eu, ec, te, row_scales, cmean, crstd,
                w_ux, w_cx, w_t, b_u, b_c)
    out_bytes = Bp * P * 4 + Bp * Np * 4
    bytes_accessed = sum(int(a.size) * a.dtype.itemsize for a in operands) + out_bytes
    flops = 2 * Bp * (P * P + Ck * Np + T * (P + Np))

    return pl.pallas_call(
        fused_forward_kernel,
        out_shape=(
            jax.ShapeDtypeStruct((Bp, P), jnp.float32),
            jax.ShapeDtypeStruct((Bp, Np), jnp.float32),
        ),
        grid=(1,),
        in_specs=[
            pl.BlockSpec((Bp, P), lambda i: (0, 0)),        # xu
            pl.BlockSpec((Bp, Ck), lambda i: (0, 0)),       # xc (K-padded)
            pl.BlockSpec((Bp, P), lambda i: (0, 0)),        # eps_udf
            pl.BlockSpec((Bp, Ck), lambda i: (0, 0)),       # eps_contacts (padded)
            pl.BlockSpec((Bp, T), lambda i: (0, 0)),        # t_emb
            pl.BlockSpec((Bp, 4), lambda i: (0, 0)),        # per-row scales
            pl.BlockSpec((1, Ck), lambda i: (0, 0)),        # contacts mean
            pl.BlockSpec((1, Ck), lambda i: (0, 0)),        # contacts 1/std
            pl.BlockSpec((P, P), lambda i: (0, 0)),         # w_udf_x (bf16)
            pl.BlockSpec((Ck, Np), lambda i: (0, 0)),       # w_con_x (bf16)
            pl.BlockSpec((T, P + Np), lambda i: (0, 0)),    # merged w_time (bf16)
            pl.BlockSpec((1, P), lambda i: (0, 0)),         # b_udf
            pl.BlockSpec((1, Np), lambda i: (0, 0)),        # b_con
        ],
        out_specs=[
            pl.BlockSpec((Bp, P), lambda i: (0, 0)),
            pl.BlockSpec((Bp, Np), lambda i: (0, 0)),
        ],
        compiler_params=pltpu.CompilerParams(
            dimension_semantics=("arbitrary",)),
        cost_estimate=pl.CostEstimate(
            flops=flops, transcendentals=0, bytes_accessed=bytes_accessed),
    )(*operands)


# -----------------------------------------------------------------------------
# Model
# -----------------------------------------------------------------------------
class ContactsBPSDiffusionModelPallas:
    def __init__(self, time_steps, beta_1, beta_T, bps_dim, temporal_dim, key):
        self.time_steps = time_steps
        self.bps_dim = bps_dim
        self.temporal_dim = temporal_dim
        self.n_anchors = 32
        self.n_repeats = bps_dim // 32
        self.contacts_dim = 32 * 9                                     # 288
        self.contacts_dim_pad = ((self.contacts_dim + 127) // 128) * 128  # 384

        # beta / alpha / sigma buffers (alpha = cumprod(1 - beta))
        self.beta = jnp.linspace(beta_1, beta_T, time_steps, dtype=jnp.float32)
        self.alpha = jnp.exp(jnp.cumsum(jnp.log(1.0 - self.beta)))
        self.sigma = jnp.sqrt(self.beta)

        # deterministic synthetic dataset stats (set_dataset_stats surrogate)
        self.x_udf_mean = jnp.array([0.10, 0.25], dtype=jnp.float32)
        self.x_udf_std = jnp.array([0.40, 0.55], dtype=jnp.float32)
        self.x_contacts_mean = jnp.linspace(-0.2, 0.2, 9).astype(jnp.float32)
        self.x_contacts_std = jnp.linspace(0.5, 1.5, 9).astype(jnp.float32)

        # scalar UDF stats use index 1 (torch: x_udf_mean[1] / x_udf_std[1])
        self.udf_mean1 = self.x_udf_mean[1]
        self.udf_rstd1 = 1.0 / self.x_udf_std[1]

        # contacts stats tiled 32x (anchors-major flatten of (32, 9)),
        # reciprocal std, zero-padded 288 -> 384 so the padding lanes stay zero.
        Cc, Ck = self.contacts_dim, self.contacts_dim_pad
        cmean = jnp.tile(self.x_contacts_mean, (32,))
        crstd = jnp.tile(1.0 / self.x_contacts_std, (32,))
        self.cmean_t = jnp.pad(cmean, (0, Ck - Cc))[None, :]           # (1, 384)
        self.crstd_t = jnp.pad(crstd, (0, Ck - Cc))[None, :]           # (1, 384)

        # surrogate backbone head weights — concat-matmul split into x / time
        # parts, bf16 storage, contacts K and N padded 288 -> 384 with zeros,
        # both time-emb heads merged along N into one (T, P+Np) weight.
        # TODO(synk): real 3D UNet backbone not available in the provided source.
        k1, k2, k3, k4, k5, k6 = jax.random.split(key, 6)
        P, T, Np = bps_dim, temporal_dim, self.contacts_dim_pad
        self.w_udf_x = (0.02 * jax.random.normal(k1, (P, P), jnp.float32)
                        ).astype(jnp.bfloat16)
        w_con_x = 0.02 * jax.random.normal(k3, (Cc, Cc), jnp.float32)
        self.w_con_x = jnp.pad(
            w_con_x, ((0, Ck - Cc), (0, Np - Cc))).astype(jnp.bfloat16)   # (384, 384)
        w_udf_t = 0.02 * jax.random.normal(k2, (T, P), jnp.float32)
        w_con_t = 0.02 * jax.random.normal(k4, (T, Cc), jnp.float32)
        w_con_t = jnp.pad(w_con_t, ((0, 0), (0, Np - Cc)))
        self.w_time = jnp.concatenate(
            [w_udf_t, w_con_t], axis=1).astype(jnp.bfloat16)              # (T, 896)
        self.b_udf = 0.01 * jax.random.normal(k5, (1, P), jnp.float32)
        b_con = 0.01 * jax.random.normal(k6, (1, Cc), jnp.float32)
        self.b_con = jnp.pad(b_con, ((0, 0), (0, Np - Cc)))

    def _time_embed(self, t):
        # SinusoidalPosEncoder surrogate: (B, 1) int -> (B, temporal_dim)
        half = self.temporal_dim // 2
        freqs = jnp.exp(-math.log(10000.0) * jnp.arange(half) / half)
        ang = t.astype(jnp.float32) * freqs[None, :]
        return jnp.concatenate([jnp.sin(ang), jnp.cos(ang)], axis=-1)

    def forward(self, x, key):
        B, P, C = x.shape
        assert P == self.bps_dim and C == 10
        Cc, Ck, Np, T = (self.contacts_dim, self.contacts_dim_pad,
                         self.contacts_dim_pad, self.temporal_dim)
        Bp = max(8, ((B + 7) // 8) * 8)          # sublane-aligned batch tile

        k_t, k_eu, k_ec = jax.random.split(key, 3)
        t = jax.random.randint(k_t, (B, 1), 0, self.time_steps)          # (B, 1)
        eps_udf = jax.random.normal(k_eu, (B, P), dtype=jnp.float32)
        eps_contacts = jax.random.normal(k_ec, (B, Cc), dtype=jnp.float32)

        batched_alpha = self.alpha[t[:, 0]]                              # (B,)
        sqrt_a = jnp.sqrt(batched_alpha)
        sqrt_1ma = jnp.sqrt(1.0 - batched_alpha)

        # Per-row scales with the scalar UDF standardization folded in:
        #   du = (sa/std)*x_udf + (-sa*mean/std) + s1a*eps
        row_scales = jnp.stack(
            [sqrt_a * self.udf_rstd1,
             -sqrt_a * self.udf_rstd1 * self.udf_mean1,
             sqrt_a,
             sqrt_1ma], axis=1).astype(jnp.float32)                      # (B, 4)

        t_emb = self._time_embed(t)                                      # (B, T)

        # Lane-dense per-batch slabs (tiny XLA glue, a few KB total).
        x_udf_raw = x[:, :, 0]                                           # (B, P)
        # TODO(synk): fetch_gaussian_params_from_CHOIR approximated — first
        # repeat of each of the 32 anchors, channels 1:. Kept in the wrapper:
        # the anchors-major flatten would otherwise need an in-kernel
        # (32,9)->(1,288) relayout, and the gathered data is only ~2 KB.
        anchor_rows = jnp.arange(32) * self.n_repeats
        x_con_raw = x[:, anchor_rows, 1:].reshape(B, Cc)                 # (B, 288)

        pad_b = Bp - B

        def pad_rows(a):
            return jnp.pad(a, ((0, pad_b),) + ((0, 0),) * (a.ndim - 1))

        xu_p = pad_rows(x_udf_raw)                                       # (Bp, P)
        eu_p = pad_rows(eps_udf)                                         # (Bp, P)
        xc_p = jnp.pad(x_con_raw, ((0, pad_b), (0, Ck - Cc)))            # (Bp, 384)
        ec_p = jnp.pad(eps_contacts, ((0, pad_b), (0, Ck - Cc)))         # (Bp, 384)
        te_p = pad_rows(t_emb)                                           # (Bp, T)
        rs_p = pad_rows(row_scales)                                      # (Bp, 4)

        eps_hat_udf_p, eps_hat_con_p = fused_forward(
            xu_p, xc_p, eu_p, ec_p, te_p, rs_p,
            self.cmean_t, self.crstd_t,
            self.w_udf_x, self.w_con_x, self.w_time,
            self.b_udf, self.b_con)

        eps_hat_udf = eps_hat_udf_p[:B].reshape(B, P, 1)
        eps_hat_contacts = eps_hat_con_p[:B, :Cc]

        return {
            "udf": (eps_hat_udf, eps_udf.reshape(B, P, 1)),
            "contacts": (eps_hat_contacts, eps_contacts),
        }


# -----------------------------------------------------------------------------
if __name__ == "__main__":
    B = 2
    bps_dim = 512          # 8**3 -> bps_grid_len = 8
    temporal_dim = 32
    time_steps = 100

    key = jax.random.PRNGKey(0)
    k_model, k_x, k_fwd = jax.random.split(key, 3)

    model = ContactsBPSDiffusionModelPallas(
        time_steps=time_steps, beta_1=1e-4, beta_T=0.02,
        bps_dim=bps_dim, temporal_dim=temporal_dim, key=k_model)

    # x: (B, bps_dim, 10) — channel 0 = UDF in [0,1), channels 1..9 = contacts
    x = jax.random.uniform(k_x, (B, bps_dim, 10), dtype=jnp.float32)

    out = model.forward(x, k_fwd)
    jax.block_until_ready(out)

    eps_hat_udf, eps_udf = out["udf"]
    eps_hat_con, eps_con = out["contacts"]
    assert eps_hat_udf.shape == (B, bps_dim, 1) and eps_udf.shape == (B, bps_dim, 1)
    assert eps_hat_con.shape == (B, 32 * 9) and eps_con.shape == (B, 32 * 9)
    assert not bool(jnp.isnan(eps_hat_udf).any())
    assert not bool(jnp.isnan(eps_hat_con).any())
    print("KERNEL_OK")
</pallas_src>

<mosaic_0001>
module attributes {stable_mosaic.version = 11 : i64} {
  func.func @fused_forward_kernel(%arg0: i32, %arg1: memref<8x512xf32, #tpu.memory_space<vmem>>, %arg2: memref<8x384xf32, #tpu.memory_space<vmem>>, %arg3: memref<8x512xf32, #tpu.memory_space<vmem>>, %arg4: memref<8x384xf32, #tpu.memory_space<vmem>>, %arg5: memref<8x32xf32, #tpu.memory_space<vmem>>, %arg6: memref<8x4xf32, #tpu.memory_space<vmem>>, %arg7: memref<1x384xf32, #tpu.memory_space<vmem>>, %arg8: memref<1x384xf32, #tpu.memory_space<vmem>>, %arg9: memref<512x512xbf16, #tpu.memory_space<vmem>>, %arg10: memref<384x384xbf16, #tpu.memory_space<vmem>>, %arg11: memref<32x896xbf16, #tpu.memory_space<vmem>>, %arg12: memref<1x512xf32, #tpu.memory_space<vmem>>, %arg13: memref<1x384xf32, #tpu.memory_space<vmem>>, %arg14: memref<8x512xf32, #tpu.memory_space<vmem>>, %arg15: memref<8x384xf32, #tpu.memory_space<vmem>>) attributes {dimension_semantics = [#tpu.dimension_semantics<arbitrary>], iteration_bounds = array<i64: 1>, scalar_prefetch = 0 : i64, scratch_operands = 0 : i64, tpu.core_type = #tpu.core_type<tc>, window_params = [{pipeline_mode = #tpu.pipeline_mode<synchronous>, transform_indices = @transform_0, window_bounds = array<i64: 8, 512>}, {pipeline_mode = #tpu.pipeline_mode<synchronous>, transform_indices = @transform_1, window_bounds = array<i64: 8, 384>}, {pipeline_mode = #tpu.pipeline_mode<synchronous>, transform_indices = @transform_2, window_bounds = array<i64: 8, 512>}, {pipeline_mode = #tpu.pipeline_mode<synchronous>, transform_indices = @transform_3, window_bounds = array<i64: 8, 384>}, {pipeline_mode = #tpu.pipeline_mode<synchronous>, transform_indices = @transform_4, window_bounds = array<i64: 8, 32>}, {pipeline_mode = #tpu.pipeline_mode<synchronous>, transform_indices = @transform_5, window_bounds = array<i64: 8, 4>}, {pipeline_mode = #tpu.pipeline_mode<synchronous>, transform_indices = @transform_6, window_bounds = array<i64: 1, 384>}, {pipeline_mode = #tpu.pipeline_mode<synchronous>, transform_indices = @transform_7, window_bounds = array<i64: 1, 384>}, {pipeline_mode = #tpu.pipeline_mode<synchronous>, transform_indices = @transform_8, window_bounds = array<i64: 512, 512>}, {pipeline_mode = #tpu.pipeline_mode<synchronous>, transform_indices = @transform_9, window_bounds = array<i64: 384, 384>}, {pipeline_mode = #tpu.pipeline_mode<synchronous>, transform_indices = @transform_10, window_bounds = array<i64: 32, 896>}, {pipeline_mode = #tpu.pipeline_mode<synchronous>, transform_indices = @transform_11, window_bounds = array<i64: 1, 512>}, {pipeline_mode = #tpu.pipeline_mode<synchronous>, transform_indices = @transform_12, window_bounds = array<i64: 1, 384>}, {pipeline_mode = #tpu.pipeline_mode<synchronous>, transform_indices = @transform_13, window_bounds = array<i64: 8, 512>}, {pipeline_mode = #tpu.pipeline_mode<synchronous>, transform_indices = @transform_14, window_bounds = array<i64: 8, 384>}]} {
    %c0 = arith.constant 0 : index
    %c0_0 = arith.constant 0 : index
    %0 = vector.load %arg6[%c0, %c0_0] : memref<8x4xf32, #tpu.memory_space<vmem>>, vector<8x4xf32>
    %1 = vector.extract_strided_slice %0 {offsets = [0, 0], sizes = [8, 1], strides = [1, 1]} : vector<8x4xf32> to vector<8x1xf32>
    %2 = vector.extract_strided_slice %0 {offsets = [0, 1], sizes = [8, 1], strides = [1, 1]} : vector<8x4xf32> to vector<8x1xf32>
    %3 = vector.extract_strided_slice %0 {offsets = [0, 2], sizes = [8, 1], strides = [1, 1]} : vector<8x4xf32> to vector<8x1xf32>
    %4 = vector.extract_strided_slice %0 {offsets = [0, 3], sizes = [8, 1], strides = [1, 1]} : vector<8x4xf32> to vector<8x1xf32>
    %c0_1 = arith.constant 0 : index
    %c0_2 = arith.constant 0 : index
    %5 = vector.load %arg1[%c0_1, %c0_2] : memref<8x512xf32, #tpu.memory_space<vmem>>, vector<8x512xf32>
    %6 = vector.broadcast %1 : vector<8x1xf32> to vector<8x512xf32>
    %7 = arith.mulf %6, %5 : vector<8x512xf32>
    %8 = vector.broadcast %2 : vector<8x1xf32> to vector<8x512xf32>
    %9 = arith.addf %7, %8 : vector<8x512xf32>
    %c0_3 = arith.constant 0 : index
    %c0_4 = arith.constant 0 : index
    %10 = vector.load %arg3[%c0_3, %c0_4] : memref<8x512xf32, #tpu.memory_space<vmem>>, vector<8x512xf32>
    %11 = vector.broadcast %4 : vector<8x1xf32> to vector<8x512xf32>
    %12 = arith.mulf %11, %10 : vector<8x512xf32>
    %13 = arith.addf %9, %12 : vector<8x512xf32>
    %c0_5 = arith.constant 0 : index
    %c0_6 = arith.constant 0 : index
    %14 = vector.load %arg2[%c0_5, %c0_6] : memref<8x384xf32, #tpu.memory_space<vmem>>, vector<8x384xf32>
    %c0_7 = arith.constant 0 : index
    %c0_8 = arith.constant 0 : index
    %15 = vector.load %arg7[%c0_7, %c0_8] : memref<1x384xf32, #tpu.memory_space<vmem>>, vector<1x384xf32>
    %16 = vector.broadcast %15 : vector<1x384xf32> to vector<8x384xf32>
    %17 = arith.subf %14, %16 : vector<8x384xf32>
    %c0_9 = arith.constant 0 : index
    %c0_10 = arith.constant 0 : index
    %18 = vector.load %arg8[%c0_9, %c0_10] : memref<1x384xf32, #tpu.memory_space<vmem>>, vector<1x384xf32>
    %19 = vector.broadcast %18 : vector<1x384xf32> to vector<8x384xf32>
    %20 = arith.mulf %17, %19 : vector<8x384xf32>
    %21 = vector.broadcast %3 : vector<8x1xf32> to vector<8x384xf32>
    %22 = arith.mulf %21, %20 : vector<8x384xf32>
    %c0_11 = arith.constant 0 : index
    %c0_12 = arith.constant 0 : index
    %23 = vector.load %arg4[%c0_11, %c0_12] : memref<8x384xf32, #tpu.memory_space<vmem>>, vector<8x384xf32>
    %24 = vector.broadcast %4 : vector<8x1xf32> to vector<8x384xf32>
    %25 = arith.mulf %24, %23 : vector<8x384xf32>
    %26 = arith.addf %22, %25 : vector<8x384xf32>
    %c0_13 = arith.constant 0 : index
    %c0_14 = arith.constant 0 : index
    %27 = vector.load %arg5[%c0_13, %c0_14] : memref<8x32xf32, #tpu.memory_space<vmem>>, vector<8x32xf32>
    %28 = arith.truncf %27 : vector<8x32xf32> to vector<8x32xbf16>
    %c0_15 = arith.constant 0 : index
    %c0_16 = arith.constant 0 : index
    %29 = vector.load %arg11[%c0_15, %c0_16] : memref<32x896xbf16, #tpu.memory_space<vmem>>, vector<32x896xbf16>
    %cst = arith.constant dense<0.000000e+00> : vector<8x896xf32>
    %30 = tpu.matmul %28, %29, %cst {dimension_numbers = #tpu.dot_dimension_numbers<[1], [0], [0], [1], [0, 0, 1, 1], [], []>} : vector<8x32xbf16>, vector<32x896xbf16>, vector<8x896xf32> -> vector<8x896xf32>
    %31 = arith.truncf %13 : vector<8x512xf32> to vector<8x512xbf16>
    %c0_17 = arith.constant 0 : index
    %c0_18 = arith.constant 0 : index
    %32 = vector.load %arg9[%c0_17, %c0_18] : memref<512x512xbf16, #tpu.memory_space<vmem>>, vector<512x512xbf16>
    %cst_19 = arith.constant dense<0.000000e+00> : vector<8x512xf32>
    %33 = tpu.matmul %31, %32, %cst_19 {dimension_numbers = #tpu.dot_dimension_numbers<[1], [0], [0], [1], [0, 0, 1, 1], [], []>} : vector<8x512xbf16>, vector<512x512xbf16>, vector<8x512xf32> -> vector<8x512xf32>
    %34 = vector.extract_strided_slice %30 {offsets = [0, 0], sizes = [8, 512], strides = [1, 1]} : vector<8x896xf32> to vector<8x512xf32>
    %35 = arith.addf %33, %34 : vector<8x512xf32>
    %c0_20 = arith.constant 0 : index
    %c0_21 = arith.constant 0 : index
    %36 = vector.load %arg12[%c0_20, %c0_21] : memref<1x512xf32, #tpu.memory_space<vmem>>, vector<1x512xf32>
    %37 = vector.broadcast %36 : vector<1x512xf32> to vector<8x512xf32>
    %38 = arith.addf %35, %37 : vector<8x512xf32>
    %c0_22 = arith.constant 0 : index
    %c0_23 = arith.constant 0 : index
    %39 = vector.load %arg14[%c0_22, %c0_23] : memref<8x512xf32, #tpu.memory_space<vmem>>, vector<8x512xf32>
    tpu.vector_store %arg14[%c0_22, %c0_23], %38 {strides = array<i32>} : memref<8x512xf32, #tpu.memory_space<vmem>>, vector<8x512xf32>,
    %40 = arith.truncf %26 : vector<8x384xf32> to vector<8x384xbf16>
    %c0_24 = arith.constant 0 : index
    %c0_25 = arith.constant 0 : index
    %41 = vector.load %arg10[%c0_24, %c0_25] : memref<384x384xbf16, #tpu.memory_space<vmem>>, vector<384x384xbf16>
    %cst_26 = arith.constant dense<0.000000e+00> : vector<8x384xf32>
    %42 = tpu.matmul %40, %41, %cst_26 {dimension_numbers = #tpu.dot_dimension_numbers<[1], [0], [0], [1], [0, 0, 1, 1], [], []>} : vector<8x384xbf16>, vector<384x384xbf16>, vector<8x384xf32> -> vector<8x384xf32>
    %43 = vector.extract_strided_slice %30 {offsets = [0, 512], sizes = [8, 384], strides = [1, 1]} : vector<8x896xf32> to vector<8x384xf32>
    %44 = arith.addf %42, %43 : vector<8x384xf32>
    %c0_27 = arith.constant 0 : index
    %c0_28 = arith.constant 0 : index
    %45 = vector.load %arg13[%c0_27, %c0_28] : memref<1x384xf32, #tpu.memory_space<vmem>>, vector<1x384xf32>
    %46 = vector.broadcast %45 : vector<1x384xf32> to vector<8x384xf32>
    %47 = arith.addf %44, %46 : vector<8x384xf32>
    %c0_29 = arith.constant 0 : index
    %c0_30 = arith.constant 0 : index
    %48 = vector.load %arg15[%c0_29, %c0_30] : memref<8x384xf32, #tpu.memory_space<vmem>>, vector<8x384xf32>
    tpu.vector_store %arg15[%c0_29, %c0_30], %47 {strides = array<i32>} : memref<8x384xf32, #tpu.memory_space<vmem>>, vector<8x384xf32>,
    return
  }
  func.func @transform_0(%arg0: i32) -> (i32, i32) {
    %c0_i32 = arith.constant 0 : i32
    %c0_i32_0 = arith.constant 0 : i32
    %c0_i32_1 = arith.constant 0 : i32
    return %c0_i32, %c0_i32_0 : i32, i32
  }
  func.func @transform_1(%arg0: i32) -> (i32, i32) {
    %c0_i32 = arith.constant 0 : i32
    %c0_i32_0 = arith.constant 0 : i32
    %c0_i32_1 = arith.constant 0 : i32
    return %c0_i32, %c0_i32_0 : i32, i32
  }
  func.func @transform_2(%arg0: i32) -> (i32, i32) {
    %c0_i32 = arith.constant 0 : i32
    %c0_i32_0 = arith.constant 0 : i32
    %c0_i32_1 = arith.constant 0 : i32
    return %c0_i32, %c0_i32_0 : i32, i32
  }
  func.func @transform_3(%arg0: i32) -> (i32, i32) {
    %c0_i32 = arith.constant 0 : i32
    %c0_i32_0 = arith.constant 0 : i32
    %c0_i32_1 = arith.constant 0 : i32
    return %c0_i32, %c0_i32_0 : i32, i32
  }
  func.func @transform_4(%arg0: i32) -> (i32, i32) {
    %c0_i32 = arith.constant 0 : i32
    %c0_i32_0 = arith.constant 0 : i32
    %c0_i32_1 = arith.constant 0 : i32
    return %c0_i32, %c0_i32_0 : i32, i32
  }
  func.func @transform_5(%arg0: i32) -> (i32, i32) {
    %c0_i32 = arith.constant 0 : i32
    %c0_i32_0 = arith.constant 0 : i32
    %c0_i32_1 = arith.constant 0 : i32
    return %c0_i32, %c0_i32_0 : i32, i32
  }
  func.func @transform_6(%arg0: i32) -> (i32, i32) {
    %c0_i32 = arith.constant 0 : i32
    %c0_i32_0 = arith.constant 0 : i32
    %c0_i32_1 = arith.constant 0 : i32
    return %c0_i32, %c0_i32_0 : i32, i32
  }
  func.func @transform_7(%arg0: i32) -> (i32, i32) {
    %c0_i32 = arith.constant 0 : i32
    %c0_i32_0 = arith.constant 0 : i32
    %c0_i32_1 = arith.constant 0 : i32
    return %c0_i32, %c0_i32_0 : i32, i32
  }
  func.func @transform_8(%arg0: i32) -> (i32, i32) {
    %c0_i32 = arith.constant 0 : i32
    %c0_i32_0 = arith.constant 0 : i32
    %c0_i32_1 = arith.constant 0 : i32
    return %c0_i32, %c0_i32_0 : i32, i32
  }
  func.func @transform_9(%arg0: i32) -> (i32, i32) {
    %c0_i32 = arith.constant 0 : i32
    %c0_i32_0 = arith.constant 0 : i32
    %c0_i32_1 = arith.constant 0 : i32
    return %c0_i32, %c0_i32_0 : i32, i32
  }
  func.func @transform_10(%arg0: i32) -> (i32, i32) {
    %c0_i32 = arith.constant 0 : i32
    %c0_i32_0 = arith.constant 0 : i32
    %c0_i32_1 = arith.constant 0 : i32
    return %c0_i32, %c0_i32_0 : i32, i32
  }
  func.func @transform_11(%arg0: i32) -> (i32, i32) {
    %c0_i32 = arith.constant 0 : i32
    %c0_i32_0 = arith.constant 0 : i32
    %c0_i32_1 = arith.constant 0 : i32
    return %c0_i32, %c0_i32_0 : i32, i32
  }
  func.func @transform_12(%arg0: i32) -> (i32, i32) {
    %c0_i32 = arith.constant 0 : i32
    %c0_i32_0 = arith.constant 0 : i32
    %c0_i32_1 = arith.constant 0 : i32
    return %c0_i32, %c0_i32_0 : i32, i32
  }
  func.func @transform_13(%arg0: i32) -> (i32, i32) {
    %c0_i32 = arith.constant 0 : i32
    %c0_i32_0 = arith.constant 0 : i32
    %c0_i32_1 = arith.constant 0 : i32
    return %c0_i32, %c0_i32_0 : i32, i32
  }
  func.func @transform_14(%arg0: i32) -> (i32, i32) {
    %c0_i32 = arith.constant 0 : i32
    %c0_i32_0 = arith.constant 0 : i32
    %c0_i32_1 = arith.constant 0 : i32
    return %c0_i32, %c0_i32_0 : i32, i32
  }
}

</mosaic_0001>

<llo_original>
// kernel: tpu_custom_call.1
$region0: #{tpu_custom_call.1}
  #allocation0 [shape = 'u32[]', space=smem, size = 0x4, offset = 0x4, fixed_abs, tag = 'smem constant byte address 0x4 - core index']
  #allocation1 [shape = 'u32[144,128]{1,0:T(1,128)}', space=vmem, size = 0x12000, scoped, tag = 'internal scratch']
  %s0 = inlined_call_operand.hbm [shape: f32[8,512], index: 0, kind: input, shape index: {}]
  %s1 = inlined_call_operand.hbm [shape: f32[8,384], index: 1, kind: input, shape index: {}]
  %s2 = inlined_call_operand.hbm [shape: f32[8,512], index: 2, kind: input, shape index: {}]
  %s3 = inlined_call_operand.hbm [shape: f32[8,384], index: 3, kind: input, shape index: {}]
  %s4 = inlined_call_operand.vmem [shape: f32[8,32], index: 4, kind: input, shape index: {}]
  %s5 = inlined_call_operand.vmem [shape: f32[8,4], index: 5, kind: input, shape index: {}]
  %s6 = inlined_call_operand.vmem [shape: f32[1,384], index: 6, kind: input, shape index: {}]
  %s7 = inlined_call_operand.vmem [shape: f32[1,384], index: 7, kind: input, shape index: {}]
  %s8 = inlined_call_operand.hbm [shape: bf16[512,512], index: 8, kind: input, shape index: {}]
  %s9 = inlined_call_operand.hbm [shape: bf16[384,384], index: 9, kind: input, shape index: {}]
  %s10 = inlined_call_operand.hbm [shape: bf16[32,896], index: 10, kind: input, shape index: {}]
  %s11 = inlined_call_operand.vmem [shape: f32[1,512], index: 11, kind: input, shape index: {}]
  %s12 = inlined_call_operand.vmem [shape: f32[1,384], index: 12, kind: input, shape index: {}]
  %s13 = inlined_call_operand.hbm [shape: f32[8,512], index: 13, kind: output, shape index: {0}]
  %s14 = inlined_call_operand.hbm [shape: f32[8,384], index: 14, kind: output, shape index: {1}]
  %15 = xla_tuple %s13, %s14
  %s16 = sld [smem:[#allocation0]]
  $region98: #{tpu_custom_call.1} parent=0
    _
  %s18 = ssub.s32 1, %s16
  %s19 = scalar_select 0, %s18, %s16
  $region1: #{tpu_custom_call.1} parent=0
    #allocation2 [shape = 'u8[16384]{0}', space=vmem, size = 0x4000, scoped, tag = 'input window, operand 0, single buffered']
    #allocation3 [shape = 's32[1]{0}', space=sflag, size = 0x4, scoped, tag = 'scoped memory for tpu_custom_call.1']
    #allocation4 [shape = 's32[1]{0}', space=sflag, size = 0x4, scoped, tag = 'scoped memory for tpu_custom_call.1']
    #allocation5 [shape = 'u8[12288]{0}', space=vmem, size = 0x3000, scoped, tag = 'input window, operand 1, single buffered']
    #allocation6 [shape = 's32[1]{0}', space=sflag, size = 0x4, scoped, tag = 'scoped memory for tpu_custom_call.1']
    #allocation7 [shape = 'u8[16384]{0}', space=vmem, size = 0x4000, scoped, tag = 'input window, operand 2, single buffered']
    #allocation8 [shape = 'u8[12288]{0}', space=vmem, size = 0x3000, scoped, tag = 'input window, operand 3, single buffered']
    #allocation9 [shape = 's32[1]{0}', space=sflag, size = 0x4, scoped, tag = 'scoped memory for tpu_custom_call.1']
    #allocation10 [shape = 'u8[524288]{0}', space=vmem, size = 0x80000, scoped, tag = 'input window, operand 8, single buffered']
    #allocation11 [shape = 'u8[294912]{0}', space=vmem, size = 0x48000, scoped, tag = 'input window, operand 9, single buffered']
    #allocation12 [shape = 's32[1]{0}', space=sflag, size = 0x4, scoped, tag = 'scoped memory for tpu_custom_call.1']
    #allocation13 [shape = 'u8[57344]{0}', space=vmem, size = 0xe000, scoped, tag = 'input window, operand 10, single buffered']
    #allocation14 [shape = 'u8[16384]{0}', space=vmem, size = 0x4000, scoped, tag = 'output window, operand 0, single buffered']
    #allocation15 [shape = 'u8[12288]{0}', space=vmem, size = 0x3000, scoped, tag = 'output window, operand 1, single buffered']
    #allocation16 [shape = 's32[1]{0}', space=sflag, size = 0x4, scoped, tag = 'scoped memory for tpu_custom_call.1']
    %20 = vsyncpa [#allocation3], 0
    %21 = vsyncpa [#allocation6], 0
    %22 = vsyncpa [#allocation9], 0
    %23 = vsyncpa [#allocation12], 0
    %24 = vsyncpa [#allocation4], 0
    %25 = vsyncpa [#allocation16], 0
    // Predicated region
    $region2: #{tpu_custom_call.1} parent=1 // pred_check
      _
    $region3: #{tpu_custom_call.1} parent=1 // pred_check_branch
      %27 = sbr.rel (0) target = $region5
    $region4: #{tpu_custom_call.1} parent=1 // pred_region
      %s29 = ssub.s32 512, 512
      %30 = vsyncadd [#allocation3], %s29
      %s32 = sshll.u32 [#allocation2], 4
      %s33 = int_to_ptr.vmem [resolvable:$true] %s32
      %35 = dma.hbm_to_vmem [thread:$0]  %s0, 512, %s33, [#allocation3]
    $region5: #{tpu_custom_call.1} parent=1 // pred_fallthru
      _
    // Predicated region
    $region6: #{tpu_custom_call.1} parent=1 // pred_check
      _
    $region7: #{tpu_custom_call.1} parent=1 // pred_check_branch
      %37 = sbr.rel (0) target = $region9
    $region8: #{tpu_custom_call.1} parent=1 // pred_region
      %s39 = ssub.s32 384, 384
      %40 = vsyncadd [#allocation6], %s39
      %s42 = sshll.u32 [#allocation5], 4
      %s43 = int_to_ptr.vmem [resolvable:$true] %s42
      %45 = dma.hbm_to_vmem [thread:$0]  %s1, 384, %s43, [#allocation6]
    $region9: #{tpu_custom_call.1} parent=1 // pred_fallthru
      _
    // Predicated region
    $region10: #{tpu_custom_call.1} parent=1 // pred_check
      _
    $region11: #{tpu_custom_call.1} parent=1 // pred_check_branch
      %47 = sbr.rel (0) target = $region13
    $region12: #{tpu_custom_call.1} parent=1 // pred_region
      %s49 = ssub.s32 512, 512
      %50 = vsyncadd [#allocation6], %s49
      %s52 = sshll.u32 [#allocation7], 4
      %s53 = int_to_ptr.vmem [resolvable:$true] %s52
      %55 = dma.hbm_to_vmem [thread:$0]  %s2, 512, %s53, [#allocation6]
    $region13: #{tpu_custom_call.1} parent=1 // pred_fallthru
      _
    // Predicated region
    $region14: #{tpu_custom_call.1} parent=1 // pred_check
      _
    $region15: #{tpu_custom_call.1} parent=1 // pred_check_branch
      %57 = sbr.rel (0) target = $region17
    $region16: #{tpu_custom_call.1} parent=1 // pred_region
      %s59 = ssub.s32 384, 384
      %60 = vsyncadd [#allocation9], %s59
      %s62 = sshll.u32 [#allocation8], 4
      %s63 = int_to_ptr.vmem [resolvable:$true] %s62
      %65 = dma.hbm_to_vmem [thread:$0]  %s3, 384, %s63, [#allocation9]
    $region17: #{tpu_custom_call.1} parent=1 // pred_fallthru
      _
    // Predicated region
    $region18: #{tpu_custom_call.1} parent=1 // pred_check
      _
    $region19: #{tpu_custom_call.1} parent=1 // pred_check_branch
      %67 = sbr.rel (0) target = $region21
    $region20: #{tpu_custom_call.1} parent=1 // pred_region
      _
    $region21: #{tpu_custom_call.1} parent=1 // pred_fallthru
      _
    // Predicated region
    $region22: #{tpu_custom_call.1} parent=1 // pred_check
      _
    $region23: #{tpu_custom_call.1} parent=1 // pred_check_branch
      %69 = sbr.rel (0) target = $region25
    $region24: #{tpu_custom_call.1} parent=1 // pred_region
      _
    $region25: #{tpu_custom_call.1} parent=1 // pred_fallthru
      _
    // Predicated region
    $region26: #{tpu_custom_call.1} parent=1 // pred_check
      _
    $region27: #{tpu_custom_call.1} parent=1 // pred_check_branch
      %71 = sbr.rel (0) target = $region29
    $region28: #{tpu_custom_call.1} parent=1 // pred_region
      _
    $region29: #{tpu_custom_call.1} parent=1 // pred_fallthru
      _
    // Predicated region
    $region30: #{tpu_custom_call.1} parent=1 // pred_check
      _
    $region31: #{tpu_custom_call.1} parent=1 // pred_check_branch
      %73 = sbr.rel (0) target = $region33
    $region32: #{tpu_custom_call.1} parent=1 // pred_region
      _
    $region33: #{tpu_custom_call.1} parent=1 // pred_fallthru
      _
    // Predicated region
    $region34: #{tpu_custom_call.1} parent=1 // pred_check
      _
    $region35: #{tpu_custom_call.1} parent=1 // pred_check_branch
      %75 = sbr.rel (0) target = $region37
    $region36: #{tpu_custom_call.1} parent=1 // pred_region
      %s77 = ssub.s32 16384, 16384
      %78 = vsyncadd [#allocation9], %s77
      %s79 = sshll.u32 [#allocation10], 4
      %s80 = int_to_ptr.vmem [resolvable:$true] %s79
      %85 = dma.hbm_to_vmem [thread:$0]  %s8, 16384, %s80, [#allocation9], 256, 256, 16
    $region37: #{tpu_custom_call.1} parent=1 // pred_fallthru
      _
    // Predicated region
    $region38: #{tpu_custom_call.1} parent=1 // pred_check
      _
    $region39: #{tpu_custom_call.1} parent=1 // pred_check_branch
      %87 = sbr.rel (0) target = $region41
    $region40: #{tpu_custom_call.1} parent=1 // pred_region
      %s89 = ssub.s32 9216, 9216
      %90 = vsyncadd [#allocation12], %s89
      %s91 = sshll.u32 [#allocation11], 4
      %s92 = int_to_ptr.vmem [resolvable:$true] %s91
      %97 = dma.hbm_to_vmem [thread:$0]  %s9, 9216, %s92, [#allocation12], 192, 192, 12
    $region41: #{tpu_custom_call.1} parent=1 // pred_fallthru
      _
    // Predicated region
    $region42: #{tpu_custom_call.1} parent=1 // pred_check
      _
    $region43: #{tpu_custom_call.1} parent=1 // pred_check_branch
      %99 = sbr.rel (0) target = $region45
    $region44: #{tpu_custom_call.1} parent=1 // pred_region
      %s101 = ssub.s32 1792, 1792
      %102 = vsyncadd [#allocation12], %s101
      %s103 = sshll.u32 [#allocation13], 4
      %s104 = int_to_ptr.vmem [resolvable:$true] %s103
      %109 = dma.hbm_to_vmem [thread:$0]  %s10, 1792, %s104, [#allocation12], 448, 448, 28
    $region45: #{tpu_custom_call.1} parent=1 // pred_fallthru
      _
    // Predicated region
    $region46: #{tpu_custom_call.1} parent=1 // pred_check
      _
    $region47: #{tpu_custom_call.1} parent=1 // pred_check_branch
      %111 = sbr.rel (0) target = $region49
    $region48: #{tpu_custom_call.1} parent=1 // pred_region
      _
    $region49: #{tpu_custom_call.1} parent=1 // pred_fallthru
      _
    // Predicated region
    $region50: #{tpu_custom_call.1} parent=1 // pred_check
      _
    $region51: #{tpu_custom_call.1} parent=1 // pred_check_branch
      %113 = sbr.rel (0) target = $region53
    $region52: #{tpu_custom_call.1} parent=1 // pred_region
      _
    $region53: #{tpu_custom_call.1} parent=1 // pred_fallthru
      _
    // Predicated region
    $region54: #{tpu_custom_call.1} parent=1 // pred_check
      _
    $region55: #{tpu_custom_call.1} parent=1 // pred_check_branch
      %115 = sbr.rel (0) target = $region57
    $region56: #{tpu_custom_call.1} parent=1 // pred_region
      %116 = dma.done [#allocation3], 512
    $region57: #{tpu_custom_call.1} parent=1 // pred_fallthru
      _
    // Predicated region
    $region58: #{tpu_custom_call.1} parent=1 // pred_check
      _
    $region59: #{tpu_custom_call.1} parent=1 // pred_check_branch
      %118 = sbr.rel (0) target = $region61
    $region60: #{tpu_custom_call.1} parent=1 // pred_region
      %119 = dma.done [#allocation6], 384
    $region61: #{tpu_custom_call.1} parent=1 // pred_fallthru
      _
    // Predicated region
    $region62: #{tpu_custom_call.1} parent=1 // pred_check
      _
    $region63: #{tpu_custom_call.1} parent=1 // pred_check_branch
      %121 = sbr.rel (0) target = $region65
    $region64: #{tpu_custom_call.1} parent=1 // pred_region
      %122 = dma.done [#allocation6], 512
    $region65: #{tpu_custom_call.1} parent=1 // pred_fallthru
      _
    // Predicated region
    $region66: #{tpu_custom_call.1} parent=1 // pred_check
      _
    $region67: #{tpu_custom_call.1} parent=1 // pred_check_branch
      %124 = sbr.rel (0) target = $region69
    $region68: #{tpu_custom_call.1} parent=1 // pred_region
      %125 = dma.done [#allocation9], 384
    $region69: #{tpu_custom_call.1} parent=1 // pred_fallthru
      _
    // Predicated region
    $region70: #{tpu_custom_call.1} parent=1 // pred_check
      _
    $region71: #{tpu_custom_call.1} parent=1 // pred_check_branch
      %127 = sbr.rel (0) target = $region73
    $region72: #{tpu_custom_call.1} parent=1 // pred_region
      %128 = dma.done [#allocation9], 16384
    $region73: #{tpu_custom_call.1} parent=1 // pred_fallthru
      _
    // Predicated region
    $region74: #{tpu_custom_call.1} parent=1 // pred_check
      _
    $region75: #{tpu_custom_call.1} parent=1 // pred_check_branch
      %130 = sbr.rel (0) target = $region77
    $region76: #{tpu_custom_call.1} parent=1 // pred_region
      %131 = dma.done [#allocation12], 9216
    $region77: #{tpu_custom_call.1} parent=1 // pred_fallthru
      _
    // Predicated region
    $region78: #{tpu_custom_call.1} parent=1 // pred_check
      _
    $region79: #{tpu_custom_call.1} parent=1 // pred_check_branch
      %133 = sbr.rel (0) target = $region81
    $region80: #{tpu_custom_call.1} parent=1 // pred_region
      %134 = dma.done [#allocation12], 1792
    $region81: #{tpu_custom_call.1} parent=1 // pred_fallthru
      _
    %v136 = vld [vmem:[%s5] sm:$0xff]
    %v137 = vld [vmem:[#allocation2] sm:$0xff]
    %v138 = vld [vmem:[#allocation2 + $0x8] sm:$0xff]
    %v139 = vld [vmem:[#allocation2 + $0x10] sm:$0xff]
    %v140 = vld [vmem:[#allocation2 + $0x18] sm:$0xff]
    %142 = vset.pattern.permute.xlu0 0
    %143 = vperm.xlu0 %142, %v136
    %v144 = vpop.permute.xlu0 %143
    %v146 = vmul.f32 %v144, %v137
    %v147 = vmul.f32 %v144, %v138
    %v148 = vmul.f32 %v144, %v139
    %v149 = vmul.f32 %v144, %v140
    %150 = vset.pattern.permute.xlu0 1
    %151 = vperm.xlu0 %150, %v136
    %v152 = vpop.permute.xlu0 %151
    %v154 = vadd.f32 %v146, %v152
    %v155 = vadd.f32 %v147, %v152
    %v156 = vadd.f32 %v148, %v152
    %v157 = vadd.f32 %v149, %v152
    %v158 = vld [vmem:[#allocation7] sm:$0xff]
    %v159 = vld [vmem:[#allocation7 + $0x8] sm:$0xff]
    %v160 = vld [vmem:[#allocation7 + $0x10] sm:$0xff]
    %v161 = vld [vmem:[#allocation7 + $0x18] sm:$0xff]
    %162 = vset.pattern.permute.xlu0 3
    %163 = vperm.xlu0 %162, %v136
    %v164 = vpop.permute.xlu0 %163
    %v166 = vmul.f32 %v164, %v158
    %v167 = vmul.f32 %v164, %v159
    %v168 = vmul.f32 %v164, %v160
    %v169 = vmul.f32 %v164, %v161
    %v170 = vadd.f32 %v154, %v166
    %v171 = vadd.f32 %v155, %v167
    %v172 = vadd.f32 %v156, %v168
    %v173 = vadd.f32 %v157, %v169
    %v174 = vld [vmem:[#allocation5] sm:$0xff]
    %v175 = vld [vmem:[#allocation5 + $0x8] sm:$0xff]
    %v176 = vld [vmem:[#allocation5 + $0x10] sm:$0xff]
    %v177 = vld [vmem:[%s6] sm:$0x7]
    %v179 = vlaneseq
    %v180 = vshrl.u32 %v179, 7
    %v181 = vsub.s32 0, %v180
    %v182 = vrot.slane %v177, %v181
    %v183 = vlaneseq
    %v184 = vshrl.u32 %v183, 7
    %v185 = vsub.s32 1, %v184
    %v186 = vrot.slane %v177, %v185
    %v187 = vlaneseq
    %v188 = vshrl.u32 %v187, 7
    %v189 = vsub.s32 2, %v188
    %v190 = vrot.slane %v177, %v189
    %v194 = vsub.f32 %v174, %v182
    %v195 = vsub.f32 %v175, %v186
    %v196 = vsub.f32 %v176, %v190
    %v197 = vld [vmem:[%s7] sm:$0x7]
    %v199 = vlaneseq
    %v200 = vshrl.u32 %v199, 7
    %v201 = vsub.s32 0, %v200
    %v202 = vrot.slane %v197, %v201
    %v203 = vlaneseq
    %v204 = vshrl.u32 %v203, 7
    %v205 = vsub.s32 1, %v204
    %v206 = vrot.slane %v197, %v205
    %v207 = vlaneseq
    %v208 = vshrl.u32 %v207, 7
    %v209 = vsub.s32 2, %v208
    %v210 = vrot.slane %v197, %v209
    %v214 = vmul.f32 %v194, %v202
    %v215 = vmul.f32 %v195, %v206
    %v216 = vmul.f32 %v196, %v210
    %217 = vset.pattern.permute.xlu0 2
    %218 = vperm.xlu0 %217, %v136
    %v219 = vpop.permute.xlu0 %218
    %v221 = vmul.f32 %v219, %v214
    %v222 = vmul.f32 %v219, %v215
    %v223 = vmul.f32 %v219, %v216
    %v224 = vld [vmem:[#allocation8] sm:$0xff]
    %v225 = vld [vmem:[#allocation8 + $0x8] sm:$0xff]
    %v226 = vld [vmem:[#allocation8 + $0x10] sm:$0xff]
    %v227 = vmul.f32 %v164, %v224
    %v228 = vmul.f32 %v164, %v225
    %v229 = vmul.f32 %v164, %v226
    %v230 = vadd.f32 %v221, %v227
    %v231 = vadd.f32 %v222, %v228
    %v232 = vadd.f32 %v223, %v229
    %v233 = vld [vmem:[%s4] sm:$0xff]
    %v234 = vpack.c.bf16 %v233, %v233
    %v235 = vld [vmem:[#allocation13] sm:$0xff]
    %v236 = vld [vmem:[#allocation13 + $0x8] sm:$0xff]
    %v237 = vld [vmem:[#allocation13 + $0x10] sm:$0xff]
    %v238 = vld [vmem:[#allocation13 + $0x18] sm:$0xf]
    %v239 = vld [vmem:[#allocation13 + $0x1c] sm:$0xff]
    %v240 = vld [vmem:[#allocation13 + $0x24] sm:$0xff]
    %v241 = vld [vmem:[#allocation13 + $0x2c] sm:$0xff]
    %v242 = vld [vmem:[#allocation13 + $0x34] sm:$0xf]
    %v243 = vld [vmem:[#allocation13 + $0x38] sm:$0xff]
    %v244 = vld [vmem:[#allocation13 + $0x40] sm:$0xff]
    %v245 = vld [vmem:[#allocation13 + $0x48] sm:$0xff]
    %v246 = vld [vmem:[#allocation13 + $0x50] sm:$0xf]
    %v247 = vld [vmem:[#allocation13 + $0x54] sm:$0xff]
    %v248 = vld [vmem:[#allocation13 + $0x5c] sm:$0xff]
    %v249 = vld [vmem:[#allocation13 + $0x64] sm:$0xff]
    %v250 = vld [vmem:[#allocation13 + $0x6c] sm:$0xf]
    %v267 = vunpack.c.l.b16 %v235
    %v268 = vunpack.c.h.b16 %v235
    %v269 = vunpack.c.l.b16 %v236
    %v270 = vunpack.c.h.b16 %v236
    %v271 = vunpack.c.l.b16 %v237
    %v272 = vunpack.c.h.b16 %v237
    %v273 = vunpack.c.l.b16 %v238
    %v274 = vunpack.c.l.b16 %v239
    %v275 = vunpack.c.h.b16 %v239
    %v276 = vunpack.c.l.b16 %v240
    %v277 = vunpack.c.h.b16 %v240
    %v278 = vunpack.c.l.b16 %v241
    %v279 = vunpack.c.h.b16 %v241
    %v280 = vunpack.c.l.b16 %v242
    %v281 = vunpack.c.l.b16 %v243
    %v282 = vunpack.c.h.b16 %v243
    %v283 = vunpack.c.l.b16 %v244
    %v284 = vunpack.c.h.b16 %v244
    %v285 = vunpack.c.l.b16 %v245
    %v286 = vunpack.c.h.b16 %v245
    %v287 = vunpack.c.l.b16 %v246
    %v288 = vunpack.c.l.b16 %v247
    %v289 = vunpack.c.h.b16 %v247
    %v290 = vunpack.c.l.b16 %v248
    %v291 = vunpack.c.h.b16 %v248
    %v292 = vunpack.c.l.b16 %v249
    %v293 = vunpack.c.h.b16 %v249
    %v294 = vunpack.c.l.b16 %v250
    %v295 = vpack.c.b16 %v274, %v267
    %v296 = vpack.c.b16 %v275, %v268
    %v297 = vpack.c.b16 %v276, %v269
    %v298 = vpack.c.b16 %v277, %v270
    %v299 = vpack.c.b16 %v278, %v271
    %v300 = vpack.c.b16 %v279, %v272
    %v301 = vpack.c.b16 %v280, %v273
    %v302 = vpack.c.b16 %v288, %v281
    %v303 = vpack.c.b16 %v289, %v282
    %v304 = vpack.c.b16 %v290, %v283
    %v305 = vpack.c.b16 %v291, %v284
    %v306 = vpack.c.b16 %v292, %v285
    %v307 = vpack.c.b16 %v293, %v286
    %v308 = vpack.c.b16 %v294, %v287
    %vm323 = vcmask 261120
    %v325 = vsel %vm323, %v234, 0
    %327 = vmatprep.subr.bf16.mxu0 %v296
    %328 = vmatpush1.bf16.msra.mxu0 %v295
    %329 = vmatprep.subr.bf16.mxu0 %v303
    %330 = vmatpush1.bf16.msra.mxu0 %v302
    %331 = vmatprep.subr.bf16.mxu0 0
    %332 = vmatpush1.bf16.msra.mxu0 0
    %333 = vmatprep.subr.bf16.mxu0 0
    %334 = vmatpush1.bf16.msra.mxu0 0
    %335 = vmatprep.subr.bf16.mxu0 0
    %336 = vmatpush1.bf16.msra.mxu0 0
    %337 = vmatprep.subr.bf16.mxu0 0
    %338 = vmatpush1.bf16.msra.mxu0 0
    %339 = vmatprep.subr.bf16.mxu0 0
    %340 = vmatpush1.bf16.msra.mxu0 0
    %341 = vmatprep.subr.bf16.mxu0 0
    %342 = vmatpush1.bf16.msra.mxu0 0
    %343 = vmatprep.subr.bf16.mxu0 0
    %344 = vmatpush1.bf16.msra.mxu0 0
    %345 = vmatprep.subr.bf16.mxu0 0
    %346 = vmatpush1.bf16.msra.mxu0 0
    %347 = vmatprep.subr.bf16.mxu0 0
    %348 = vmatpush1.bf16.msra.mxu0 0
    %349 = vmatprep.subr.bf16.mxu0 0
    %350 = vmatpush1.bf16.msra.mxu0 0
    %351 = vmatprep.subr.bf16.mxu0 0
    %352 = vmatpush1.bf16.msra.mxu0 0
    %353 = vmatprep.subr.bf16.mxu0 0
    %354 = vmatpush1.bf16.msra.mxu0 0
    %355 = vmatprep.subr.bf16.mxu0 0
    %356 = vmatpush1.bf16.msra.mxu0 0
    %357 = vmatprep.subr.bf16.mxu0 0
    %358 = vmatpush1.bf16.msra.mxu0 0
    %359 = vmatprep.mubr.bf16.mxu0 0
    %360 = vmatmul.mubr.bf16.gmra.mrb[0].mxu0 %v325
    %v361 = vpop.f32.mrb[0].mxu0
    %v362 = vadd.f32 0.0, %v361
    %v363 = vpop.f32.mrb[0].mxu0
    %v364 = vadd.f32 0.0, %v363
    %v365 = vpop.f32.mrb[0].mxu0
    %v366 = vpop.f32.mrb[0].mxu0
    %367 = vdwg.mxu0
    %368 = vmatprep.subr.bf16.mxu0 %v298
    %369 = vmatpush1.bf16.msra.mxu0 %v297
    %370 = vmatprep.subr.bf16.mxu0 %v305
    %371 = vmatpush1.bf16.msra.mxu0 %v304
    %372 = vmatprep.subr.bf16.mxu0 0
    %373 = vmatpush1.bf16.msra.mxu0 0
    %374 = vmatprep.subr.bf16.mxu0 0
    %375 = vmatpush1.bf16.msra.mxu0 0
    %376 = vmatprep.subr.bf16.mxu0 0
    %377 = vmatpush1.bf16.msra.mxu0 0
    %378 = vmatprep.subr.bf16.mxu0 0
    %379 = vmatpush1.bf16.msra.mxu0 0
    %380 = vmatprep.subr.bf16.mxu0 0
    %381 = vmatpush1.bf16.msra.mxu0 0
    %382 = vmatprep.subr.bf16.mxu0 0
    %383 = vmatpush1.bf16.msra.mxu0 0
    %384 = vmatprep.subr.bf16.mxu0 0
    %385 = vmatpush1.bf16.msra.mxu0 0
    %386 = vmatprep.subr.bf16.mxu0 0
    %387 = vmatpush1.bf16.msra.mxu0 0
    %388 = vmatprep.subr.bf16.mxu0 0
    %389 = vmatpush1.bf16.msra.mxu0 0
    %390 = vmatprep.subr.bf16.mxu0 0
    %391 = vmatpush1.bf16.msra.mxu0 0
    %392 = vmatprep.subr.bf16.mxu0 0
    %393 = vmatpush1.bf16.msra.mxu0 0
    %394 = vmatprep.subr.bf16.mxu0 0
    %395 = vmatpush1.bf16.msra.mxu0 0
    %396 = vmatprep.subr.bf16.mxu0 0
    %397 = vmatpush1.bf16.msra.mxu0 0
    %398 = vmatprep.subr.bf16.mxu0 0
    %399 = vmatpush1.bf16.msra.mxu0 0
    %400 = vmatprep.mubr.bf16.mxu0 0
    %401 = vmatmul.mubr.bf16.gmra.mrb[0].mxu0 %v325
    %v402 = vpop.f32.mrb[0].mxu0
    %v403 = vadd.f32 0.0, %v402
    %v404 = vpop.f32.mrb[0].mxu0
    %v405 = vadd.f32 0.0, %v404
    %v406 = vpop.f32.mrb[0].mxu0
    %v407 = vpop.f32.mrb[0].mxu0
    %408 = vdwg.mxu0
    %409 = vmatprep.subr.bf16.mxu0 %v300
    %410 = vmatpush1.bf16.msra.mxu0 %v299
    %411 = vmatprep.subr.bf16.mxu0 %v307
    %412 = vmatpush1.bf16.msra.mxu0 %v306
    %413 = vmatprep.subr.bf16.mxu0 0
    %414 = vmatpush1.bf16.msra.mxu0 0
    %415 = vmatprep.subr.bf16.mxu0 0
    %416 = vmatpush1.bf16.msra.mxu0 0
    %417 = vmatprep.subr.bf16.mxu0 0
    %418 = vmatpush1.bf16.msra.mxu0 0
    %419 = vmatprep.subr.bf16.mxu0 0
    %420 = vmatpush1.bf16.msra.mxu0 0
    %421 = vmatprep.subr.bf16.mxu0 0
    %422 = vmatpush1.bf16.msra.mxu0 0
    %423 = vmatprep.subr.bf16.mxu0 0
    %424 = vmatpush1.bf16.msra.mxu0 0
    %425 = vmatprep.subr.bf16.mxu0 0
    %426 = vmatpush1.bf16.msra.mxu0 0
    %427 = vmatprep.subr.bf16.mxu0 0
    %428 = vmatpush1.bf16.msra.mxu0 0
    %429 = vmatprep.subr.bf16.mxu0 0
    %430 = vmatpush1.bf16.msra.mxu0 0
    %431 = vmatprep.subr.bf16.mxu0 0
    %432 = vmatpush1.bf16.msra.mxu0 0
    %433 = vmatprep.subr.bf16.mxu0 0
    %434 = vmatpush1.bf16.msra.mxu0 0
    %435 = vmatprep.subr.bf16.mxu0 0
    %436 = vmatpush1.bf16.msra.mxu0 0
    %437 = vmatprep.subr.bf16.mxu0 0
    %438 = vmatpush1.bf16.msra.mxu0 0
    %439 = vmatprep.subr.bf16.mxu0 0
    %440 = vmatpush1.bf16.msra.mxu0 0
    %441 = vmatprep.mubr.bf16.mxu0 0
    %442 = vmatmul.mubr.bf16.gmra.mrb[0].mxu0 %v325
    %v443 = vpop.f32.mrb[0].mxu0
    %v444 = vadd.f32 0.0, %v443
    %v445 = vpop.f32.mrb[0].mxu0
    %v446 = vadd.f32 0.0, %v445
    %v447 = vpop.f32.mrb[0].mxu0
    %v448 = vpop.f32.mrb[0].mxu0
    %449 = vdwg.mxu0
    %450 = vmatprep.subr.bf16.mxu0 0
    %451 = vmatpush1.bf16.msra.mxu0 %v301
    %452 = vmatprep.subr.bf16.mxu0 0
    %453 = vmatpush1.bf16.msra.mxu0 %v308
    %454 = vmatprep.subr.bf16.mxu0 0
    %455 = vmatpush1.bf16.msra.mxu0 0
    %456 = vmatprep.subr.bf16.mxu0 0
    %457 = vmatpush1.bf16.msra.mxu0 0
    %458 = vmatprep.subr.bf16.mxu0 0
    %459 = vmatpush1.bf16.msra.mxu0 0
    %460 = vmatprep.subr.bf16.mxu0 0
    %461 = vmatpush1.bf16.msra.mxu0 0
    %462 = vmatprep.subr.bf16.mxu0 0
    %463 = vmatpush1.bf16.msra.mxu0 0
    %464 = vmatprep.subr.bf16.mxu0 0
    %465 = vmatpush1.bf16.msra.mxu0 0
    %466 = vmatprep.subr.bf16.mxu0 0
    %467 = vmatpush1.bf16.msra.mxu0 0
    %468 = vmatprep.subr.bf16.mxu0 0
    %469 = vmatpush1.bf16.msra.mxu0 0
    %470 = vmatprep.subr.bf16.mxu0 0
    %471 = vmatpush1.bf16.msra.mxu0 0
    %472 = vmatprep.subr.bf16.mxu0 0
    %473 = vmatpush1.bf16.msra.mxu0 0
    %474 = vmatprep.subr.bf16.mxu0 0
    %475 = vmatpush1.bf16.msra.mxu0 0
    %476 = vmatprep.subr.bf16.mxu0 0
    %477 = vmatpush1.bf16.msra.mxu0 0
    %478 = vmatprep.subr.bf16.mxu0 0
    %479 = vmatpush1.bf16.msra.mxu0 0
    %480 = vmatprep.subr.bf16.mxu0 0
    %481 = vmatpush1.bf16.msra.mxu0 0
    %482 = vmatprep.mubr.bf16.mxu0 0
    %483 = vmatmul.mubr.bf16.gmra.mrb[0].mxu0 %v325
    %v484 = vpop.f32.mrb[0].mxu0
    %v485 = vadd.f32 0.0, %v484
    %v486 = vpop.f32.mrb[0].mxu0
    %v487 = vpop.f32.mrb[0].mxu0
    %v488 = vpop.f32.mrb[0].mxu0
    %489 = vdwg.mxu0
    %v490 = vpack.c.bf16 %v170, %v170
    %v491 = vpack.c.bf16 %v171, %v171
    %v492 = vpack.c.bf16 %v172, %v172
    %v493 = vpack.c.bf16 %v173, %v173
    %v494 = vld [vmem:[#allocation10] sm:$0xff]
    %v495 = vld [vmem:[#allocation10 + $0x8] sm:$0xff]
    %v496 = vld [vmem:[#allocation10 + $0x10] sm:$0xff]
    %v497 = vld [vmem:[#allocation10 + $0x18] sm:$0xff]
    %v498 = vld [vmem:[#allocation10 + $0x20] sm:$0xff]
    %v499 = vld [vmem:[#allocation10 + $0x28] sm:$0xff]
    %v500 = vld [vmem:[#allocation10 + $0x30] sm:$0xff]
    %v501 = vld [vmem:[#allocation10 + $0x38] sm:$0xff]
    %v502 = vld [vmem:[#allocation10 + $0x40] sm:$0xff]
    %v503 = vld [vmem:[#allocation10 + $0x48] sm:$0xff]
    %v504 = vld [vmem:[#allocation10 + $0x50] sm:$0xff]
    %v505 = vld [vmem:[#allocation10 + $0x58] sm:$0xff]
    %v506 = vld [vmem:[#allocation10 + $0x60] sm:$0xff]
    %v507 = vld [vmem:[#allocation10 + $0x68] sm:$0xff]
    %v508 = vld [vmem:[#allocation10 + $0x70] sm:$0xff]
    %v509 = vld [vmem:[#allocation10 + $0x78] sm:$0xff]
    %v510 = vld [vmem:[#allocation10 + $0x80] sm:$0xff]
    %v511 = vld [vmem:[#allocation10 + $0x88] sm:$0xff]
    %v512 = vld [vmem:[#allocation10 + $0x90] sm:$0xff]
    %v513 = vld [vmem:[#allocation10 + $0x98] sm:$0xff]
    %v514 = vld [vmem:[#allocation10 + $0xa0] sm:$0xff]
    %v515 = vld [vmem:[#allocation10 + $0xa8] sm:$0xff]
    %v516 = vld [vmem:[#allocation10 + $0xb0] sm:$0xff]
    %v517 = vld [vmem:[#allocation10 + $0xb8] sm:$0xff]
    %v518 = vld [vmem:[#allocation10 + $0xc0] sm:$0xff]
    %v519 = vld [vmem:[#allocation10 + $0xc8] sm:$0xff]
    %v520 = vld [vmem:[#allocation10 + $0xd0] sm:$0xff]
    %v521 = vld [vmem:[#allocation10 + $0xd8] sm:$0xff]
    %v522 = vld [vmem:[#allocation10 + $0xe0] sm:$0xff]
    %v523 = vld [vmem:[#allocation10 + $0xe8] sm:$0xff]
    %v524 = vld [vmem:[#allocation10 + $0xf0] sm:$0xff]
    %v525 = vld [vmem:[#allocation10 + $0xf8] sm:$0xff]
    %v526 = vld [vmem:[#allocation10 + $0x100] sm:$0xff]
    %v527 = vld [vmem:[#allocation10 + $0x108] sm:$0xff]
    %v528 = vld [vmem:[#allocation10 + $0x110] sm:$0xff]
    %v529 = vld [vmem:[#allocation10 + $0x118] sm:$0xff]
    %v530 = vld [vmem:[#allocation10 + $0x120] sm:$0xff]
    %v531 = vld [vmem:[#allocation10 + $0x128] sm:$0xff]
    %v532 = vld [vmem:[#allocation10 + $0x130] sm:$0xff]
    %v533 = vld [vmem:[#allocation10 + $0x138] sm:$0xff]
    %v534 = vld [vmem:[#allocation10 + $0x140] sm:$0xff]
    %v535 = vld [vmem:[#allocation10 + $0x148] sm:$0xff]
    %v536 = vld [vmem:[#allocation10 + $0x150] sm:$0xff]
    %v537 = vld [vmem:[#allocation10 + $0x158] sm:$0xff]
    %v538 = vld [vmem:[#allocation10 + $0x160] sm:$0xff]
    %v539 = vld [vmem:[#allocation10 + $0x168] sm:$0xff]
    %v540 = vld [vmem:[#allocation10 + $0x170] sm:$0xff]
    %v541 = vld [vmem:[#allocation10 + $0x178] sm:$0xff]
    %v542 = vld [vmem:[#allocation10 + $0x180] sm:$0xff]
    %v543 = vld [vmem:[#allocation10 + $0x188] sm:$0xff]
    %v544 = vld [vmem:[#allocation10 + $0x190] sm:$0xff]
    %v545 = vld [vmem:[#allocation10 + $0x198] sm:$0xff]
    %v546 = vld [vmem:[#allocation10 + $0x1a0] sm:$0xff]
    %v547 = vld [vmem:[#allocation10 + $0x1a8] sm:$0xff]
    %v548 = vld [vmem:[#allocation10 + $0x1b0] sm:$0xff]
    %v549 = vld [vmem:[#allocation10 + $0x1b8] sm:$0xff]
    %v550 = vld [vmem:[#allocation10 + $0x1c0] sm:$0xff]
    %v551 = vld [vmem:[#allocation10 + $0x1c8] sm:$0xff]
    %v552 = vld [vmem:[#allocation10 + $0x1d0] sm:$0xff]
    %v553 = vld [vmem:[#allocation10 + $0x1d8] sm:$0xff]
    %v554 = vld [vmem:[#allocation10 + $0x1e0] sm:$0xff]
    %v555 = vld [vmem:[#allocation10 + $0x1e8] sm:$0xff]
    %v556 = vld [vmem:[#allocation10 + $0x1f0] sm:$0xff]
    %v557 = vld [vmem:[#allocation10 + $0x1f8] sm:$0xff]
    %v558 = vld [vmem:[#allocation10 + $0x200] sm:$0xff]
    %v559 = vld [vmem:[#allocation10 + $0x208] sm:$0xff]
    %v560 = vld [vmem:[#allocation10 + $0x210] sm:$0xff]
    %v561 = vld [vmem:[#allocation10 + $0x218] sm:$0xff]
    %v562 = vld [vmem:[#allocation10 + $0x220] sm:$0xff]
    %v563 = vld [vmem:[#allocation10 + $0x228] sm:$0xff]
    %v564 = vld [vmem:[#allocation10 + $0x230] sm:$0xff]
    %v565 = vld [vmem:[#allocation10 + $0x238] sm:$0xff]
    %v566 = vld [vmem:[#allocation10 + $0x240] sm:$0xff]
    %v567 = vld [vmem:[#allocation10 + $0x248] sm:$0xff]
    %v568 = vld [vmem:[#allocation10 + $0x250] sm:$0xff]
    %v569 = vld [vmem:[#allocation10 + $0x258] sm:$0xff]
    %v570 = vld [vmem:[#allocation10 + $0x260] sm:$0xff]
    %v571 = vld [vmem:[#allocation10 + $0x268] sm:$0xff]
    %v572 = vld [vmem:[#allocation10 + $0x270] sm:$0xff]
    %v573 = vld [vmem:[#allocation10 + $0x278] sm:$0xff]
    %v574 = vld [vmem:[#allocation10 + $0x280] sm:$0xff]
    %v575 = vld [vmem:[#allocation10 + $0x288] sm:$0xff]
    %v576 = vld [vmem:[#allocation10 + $0x290] sm:$0xff]
    %v577 = vld [vmem:[#allocation10 + $0x298] sm:$0xff]
    %v578 = vld [vmem:[#allocation10 + $0x2a0] sm:$0xff]
    %v579 = vld [vmem:[#allocation10 + $0x2a8] sm:$0xff]
    %v580 = vld [vmem:[#allocation10 + $0x2b0] sm:$0xff]
    %v581 = vld [vmem:[#allocation10 + $0x2b8] sm:$0xff]
    %v582 = vld [vmem:[#allocation10 + $0x2c0] sm:$0xff]
    %v583 = vld [vmem:[#allocation10 + $0x2c8] sm:$0xff]
    %v584 = vld [vmem:[#allocation10 + $0x2d0] sm:$0xff]
    %v585 = vld [vmem:[#allocation10 + $0x2d8] sm:$0xff]
    %v586 = vld [vmem:[#allocation10 + $0x2e0] sm:$0xff]
    %v587 = vld [vmem:[#allocation10 + $0x2e8] sm:$0xff]
    %v588 = vld [vmem:[#allocation10 + $0x2f0] sm:$0xff]
    %v589 = vld [vmem:[#allocation10 + $0x2f8] sm:$0xff]
    %v590 = vld [vmem:[#allocation10 + $0x300] sm:$0xff]
    %v591 = vld [vmem:[#allocation10 + $0x308] sm:$0xff]
    %v592 = vld [vmem:[#allocation10 + $0x310] sm:$0xff]
    %v593 = vld [vmem:[#allocation10 + $0x318] sm:$0xff]
    %v594 = vld [vmem:[#allocation10 + $0x320] sm:$0xff]
    %v595 = vld [vmem:[#allocation10 + $0x328] sm:$0xff]
    %v596 = vld [vmem:[#allocation10 + $0x330] sm:$0xff]
    %v597 = vld [vmem:[#allocation10 + $0x338] sm:$0xff]
    %v598 = vld [vmem:[#allocation10 + $0x340] sm:$0xff]
    %v599 = vld [vmem:[#allocation10 + $0x348] sm:$0xff]
    %v600 = vld [vmem:[#allocation10 + $0x350] sm:$0xff]
    %v601 = vld [vmem:[#allocation10 + $0x358] sm:$0xff]
    %v602 = vld [vmem:[#allocation10 + $0x360] sm:$0xff]
    %v603 = vld [vmem:[#allocation10 + $0x368] sm:$0xff]
    %v604 = vld [vmem:[#allocation10 + $0x370] sm:$0xff]
    %v605 = vld [vmem:[#allocation10 + $0x378] sm:$0xff]
    %v606 = vld [vmem:[#allocation10 + $0x380] sm:$0xff]
    %v607 = vld [vmem:[#allocation10 + $0x388] sm:$0xff]
    %v608 = vld [vmem:[#allocation10 + $0x390] sm:$0xff]
    %v609 = vld [vmem:[#allocation10 + $0x398] sm:$0xff]
    %v610 = vld [vmem:[#allocation10 + $0x3a0] sm:$0xff]
    %v611 = vld [vmem:[#allocation10 + $0x3a8] sm:$0xff]
    %v612 = vld [vmem:[#allocation10 + $0x3b0] sm:$0xff]
    %v613 = vld [vmem:[#allocation10 + $0x3b8] sm:$0xff]
    %v614 = vld [vmem:[#allocation10 + $0x3c0] sm:$0xff]
    %v615 = vld [vmem:[#allocation10 + $0x3c8] sm:$0xff]
    %v616 = vld [vmem:[#allocation10 + $0x3d0] sm:$0xff]
    %v617 = vld [vmem:[#allocation10 + $0x3d8] sm:$0xff]
    %v618 = vld [vmem:[#allocation10 + $0x3e0] sm:$0xff]
    %v619 = vld [vmem:[#allocation10 + $0x3e8] sm:$0xff]
    %v620 = vld [vmem:[#allocation10 + $0x3f0] sm:$0xff]
    %v621 = vld [vmem:[#allocation10 + $0x3f8] sm:$0xff]
    %v750 = vunpack.c.l.b16 %v494
    %v751 = vunpack.c.h.b16 %v494
    %v752 = vunpack.c.l.b16 %v495
    %v753 = vunpack.c.h.b16 %v495
    %v754 = vunpack.c.l.b16 %v496
    %v755 = vunpack.c.h.b16 %v496
    %v756 = vunpack.c.l.b16 %v497
    %v757 = vunpack.c.h.b16 %v497
    %v758 = vunpack.c.l.b16 %v498
    %v759 = vunpack.c.h.b16 %v498
    %v760 = vunpack.c.l.b16 %v499
    %v761 = vunpack.c.h.b16 %v499
    %v762 = vunpack.c.l.b16 %v500
    %v763 = vunpack.c.h.b16 %v500
    %v764 = vunpack.c.l.b16 %v501
    %v765 = vunpack.c.h.b16 %v501
    %v766 = vunpack.c.l.b16 %v502
    %v767 = vunpack.c.h.b16 %v502
    %v768 = vunpack.c.l.b16 %v503
    %v769 = vunpack.c.h.b16 %v503
    %v770 = vunpack.c.l.b16 %v504
    %v771 = vunpack.c.h.b16 %v504
    %v772 = vunpack.c.l.b16 %v505
    %v773 = vunpack.c.h.b16 %v505
    %v774 = vunpack.c.l.b16 %v506
    %v775 = vunpack.c.h.b16 %v506
    %v776 = vunpack.c.l.b16 %v507
    %v777 = vunpack.c.h.b16 %v507
    %v778 = vunpack.c.l.b16 %v508
    %v779 = vunpack.c.h.b16 %v508
    %v780 = vunpack.c.l.b16 %v509
    %v781 = vunpack.c.h.b16 %v509
    %v782 = vunpack.c.l.b16 %v510
    %v783 = vunpack.c.h.b16 %v510
    %v784 = vunpack.c.l.b16 %v511
    %v785 = vunpack.c.h.b16 %v511
    %v786 = vunpack.c.l.b16 %v512
    %v787 = vunpack.c.h.b16 %v512
    %v788 = vunpack.c.l.b16 %v513
    %v789 = vunpack.c.h.b16 %v513
    %v790 = vunpack.c.l.b16 %v514
    %v791 = vunpack.c.h.b16 %v514
    %v792 = vunpack.c.l.b16 %v515
    %v793 = vunpack.c.h.b16 %v515
    %v794 = vunpack.c.l.b16 %v516
    %v795 = vunpack.c.h.b16 %v516
    %v796 = vunpack.c.l.b16 %v517
    %v797 = vunpack.c.h.b16 %v517
    %v798 = vunpack.c.l.b16 %v518
    %v799 = vunpack.c.h.b16 %v518
    %v800 = vunpack.c.l.b16 %v519
    %v801 = vunpack.c.h.b16 %v519
    %v802 = vunpack.c.l.b16 %v520
    %v803 = vunpack.c.h.b16 %v520
    %v804 = vunpack.c.l.b16 %v521
    %v805 = vunpack.c.h.b16 %v521
    %v806 = vunpack.c.l.b16 %v522
    %v807 = vunpack.c.h.b16 %v522
    %v808 = vunpack.c.l.b16 %v523
    %v809 = vunpack.c.h.b16 %v523
    %v810 = vunpack.c.l.b16 %v524
    %v811 = vunpack.c.h.b16 %v524
    %v812 = vunpack.c.l.b16 %v525
    %v813 = vunpack.c.h.b16 %v525
    %v814 = vunpack.c.l.b16 %v526
    %v815 = vunpack.c.h.b16 %v526
    %v816 = vunpack.c.l.b16 %v527
    %v817 = vunpack.c.h.b16 %v527
    %v818 = vunpack.c.l.b16 %v528
    %v819 = vunpack.c.h.b16 %v528
    %v820 = vunpack.c.l.b16 %v529
    %v821 = vunpack.c.h.b16 %v529
    %v822 = vunpack.c.l.b16 %v530
    %v823 = vunpack.c.h.b16 %v530
    %v824 = vunpack.c.l.b16 %v531
    %v825 = vunpack.c.h.b16 %v531
    %v826 = vunpack.c.l.b16 %v532
    %v827 = vunpack.c.h.b16 %v532
    %v828 = vunpack.c.l.b16 %v533
    %v829 = vunpack.c.h.b16 %v533
    %v830 = vunpack.c.l.b16 %v534
    %v831 = vunpack.c.h.b16 %v534
    %v832 = vunpack.c.l.b16 %v535
    %v833 = vunpack.c.h.b16 %v535
    %v834 = vunpack.c.l.b16 %v536
    %v835 = vunpack.c.h.b16 %v536
    %v836 = vunpack.c.l.b16 %v537
    %v837 = vunpack.c.h.b16 %v537
    %v838 = vunpack.c.l.b16 %v538
    %v839 = vunpack.c.h.b16 %v538
    %v840 = vunpack.c.l.b16 %v539
    %v841 = vunpack.c.h.b16 %v539
    %v842 = vunpack.c.l.b16 %v540
    %v843 = vunpack.c.h.b16 %v540
    %v844 = vunpack.c.l.b16 %v541
    %v845 = vunpack.c.h.b16 %v541
    %v846 = vunpack.c.l.b16 %v542
    %v847 = vunpack.c.h.b16 %v542
    %v848 = vunpack.c.l.b16 %v543
    %v849 = vunpack.c.h.b16 %v543
    %v850 = vunpack.c.l.b16 %v544
    %v851 = vunpack.c.h.b16 %v544
    %v852 = vunpack.c.l.b16 %v545
    %v853 = vunpack.c.h.b16 %v545
    %v854 = vunpack.c.l.b16 %v546
    %v855 = vunpack.c.h.b16 %v546
    %v856 = vunpack.c.l.b16 %v547
    %v857 = vunpack.c.h.b16 %v547
    %v858 = vunpack.c.l.b16 %v548
    %v859 = vunpack.c.h.b16 %v548
    %v860 = vunpack.c.l.b16 %v549
    %v861 = vunpack.c.h.b16 %v549
    %v862 = vunpack.c.l.b16 %v550
    %v863 = vunpack.c.h.b16 %v550
    %v864 = vunpack.c.l.b16 %v551
    %v865 = vunpack.c.h.b16 %v551
    %v866 = vunpack.c.l.b16 %v552
    %v867 = vunpack.c.h.b16 %v552
    %v868 = vunpack.c.l.b16 %v553
    %v869 = vunpack.c.h.b16 %v553
    %v870 = vunpack.c.l.b16 %v554
    %v871 = vunpack.c.h.b16 %v554
    %v872 = vunpack.c.l.b16 %v555
    %v873 = vunpack.c.h.b16 %v555
    %v874 = vunpack.c.l.b16 %v556
    %v875 = vunpack.c.h.b16 %v556
    %v876 = vunpack.c.l.b16 %v557
    %v877 = vunpack.c.h.b16 %v557
    %v878 = vunpack.c.l.b16 %v558
    %v879 = vunpack.c.h.b16 %v558
    %v880 = vunpack.c.l.b16 %v559
    %v881 = vunpack.c.h.b16 %v559
    %v882 = vunpack.c.l.b16 %v560
    %v883 = vunpack.c.h.b16 %v560
    %v884 = vunpack.c.l.b16 %v561
    %v885 = vunpack.c.h.b16 %v561
    %v886 = vunpack.c.l.b16 %v562
    %v887 = vunpack.c.h.b16 %v562
    %v888 = vunpack.c.l.b16 %v563
    %v889 = vunpack.c.h.b16 %v563
    %v890 = vunpack.c.l.b16 %v564
    %v891 = vunpack.c.h.b16 %v564
    %v892 = vunpack.c.l.b16 %v565
    %v893 = vunpack.c.h.b16 %v565
    %v894 = vunpack.c.l.b16 %v566
    %v895 = vunpack.c.h.b16 %v566
    %v896 = vunpack.c.l.b16 %v567
    %v897 = vunpack.c.h.b16 %v567
    %v898 = vunpack.c.l.b16 %v568
    %v899 = vunpack.c.h.b16 %v568
    %v900 = vunpack.c.l.b16 %v569
    %v901 = vunpack.c.h.b16 %v569
    %v902 = vunpack.c.l.b16 %v570
    %v903 = vunpack.c.h.b16 %v570
    %v904 = vunpack.c.l.b16 %v571
    %v905 = vunpack.c.h.b16 %v571
    %v906 = vunpack.c.l.b16 %v572
    %v907 = vunpack.c.h.b16 %v572
    %v908 = vunpack.c.l.b16 %v573
    %v909 = vunpack.c.h.b16 %v573
    %v910 = vunpack.c.l.b16 %v574
    %v911 = vunpack.c.h.b16 %v574
    %v912 = vunpack.c.l.b16 %v575
    %v913 = vunpack.c.h.b16 %v575
    %v914 = vunpack.c.l.b16 %v576
    %v915 = vunpack.c.h.b16 %v576
    %v916 = vunpack.c.l.b16 %v577
    %v917 = vunpack.c.h.b16 %v577
    %v918 = vunpack.c.l.b16 %v578
    %v919 = vunpack.c.h.b16 %v578
    %v920 = vunpack.c.l.b16 %v579
    %v921 = vunpack.c.h.b16 %v579
    %v922 = vunpack.c.l.b16 %v580
    %v923 = vunpack.c.h.b16 %v580
    %v924 = vunpack.c.l.b16 %v581
    %v925 = vunpack.c.h.b16 %v581
    %v926 = vunpack.c.l.b16 %v582
    %v927 = vunpack.c.h.b16 %v582
    %v928 = vunpack.c.l.b16 %v583
    %v929 = vunpack.c.h.b16 %v583
    %v930 = vunpack.c.l.b16 %v584
    %v931 = vunpack.c.h.b16 %v584
    %v932 = vunpack.c.l.b16 %v585
    %v933 = vunpack.c.h.b16 %v585
    %v934 = vunpack.c.l.b16 %v586
    %v935 = vunpack.c.h.b16 %v586
    %v936 = vunpack.c.l.b16 %v587
    %v937 = vunpack.c.h.b16 %v587
    %v938 = vunpack.c.l.b16 %v588
    %v939 = vunpack.c.h.b16 %v588
    %v940 = vunpack.c.l.b16 %v589
    %v941 = vunpack.c.h.b16 %v589
    %v942 = vunpack.c.l.b16 %v590
    %v943 = vunpack.c.h.b16 %v590
    %v944 = vunpack.c.l.b16 %v591
    %v945 = vunpack.c.h.b16 %v591
    %v946 = vunpack.c.l.b16 %v592
    %v947 = vunpack.c.h.b16 %v592
    %v948 = vunpack.c.l.b16 %v593
    %v949 = vunpack.c.h.b16 %v593
    %v950 = vunpack.c.l.b16 %v594
    %v951 = vunpack.c.h.b16 %v594
    %v952 = vunpack.c.l.b16 %v595
    %v953 = vunpack.c.h.b16 %v595
    %v954 = vunpack.c.l.b16 %v596
    %v955 = vunpack.c.h.b16 %v596
    %v956 = vunpack.c.l.b16 %v597
    %v957 = vunpack.c.h.b16 %v597
    %v958 = vunpack.c.l.b16 %v598
    %v959 = vunpack.c.h.b16 %v598
    %v960 = vunpack.c.l.b16 %v599
    %v961 = vunpack.c.h.b16 %v599
    %v962 = vunpack.c.l.b16 %v600
    %v963 = vunpack.c.h.b16 %v600
    %v964 = vunpack.c.l.b16 %v601
    %v965 = vunpack.c.h.b16 %v601
    %v966 = vunpack.c.l.b16 %v602
    %v967 = vunpack.c.h.b16 %v602
    %v968 = vunpack.c.l.b16 %v603
    %v969 = vunpack.c.h.b16 %v603
    %v970 = vunpack.c.l.b16 %v604
    %v971 = vunpack.c.h.b16 %v604
    %v972 = vunpack.c.l.b16 %v605
    %v973 = vunpack.c.h.b16 %v605
    %v974 = vunpack.c.l.b16 %v606
    %v975 = vunpack.c.h.b16 %v606
    %v976 = vunpack.c.l.b16 %v607
    %v977 = vunpack.c.h.b16 %v607
    %v978 = vunpack.c.l.b16 %v608
    %v979 = vunpack.c.h.b16 %v608
    %v980 = vunpack.c.l.b16 %v609
    %v981 = vunpack.c.h.b16 %v609
    %v982 = vunpack.c.l.b16 %v610
    %v983 = vunpack.c.h.b16 %v610
    %v984 = vunpack.c.l.b16 %v611
    %v985 = vunpack.c.h.b16 %v611
    %v986 = vunpack.c.l.b16 %v612
    %v987 = vunpack.c.h.b16 %v612
    %v988 = vunpack.c.l.b16 %v613
    %v989 = vunpack.c.h.b16 %v613
    %v990 = vunpack.c.l.b16 %v614
    %v991 = vunpack.c.h.b16 %v614
    %v992 = vunpack.c.l.b16 %v615
    %v993 = vunpack.c.h.b16 %v615
    %v994 = vunpack.c.l.b16 %v616
    %v995 = vunpack.c.h.b16 %v616
    %v996 = vunpack.c.l.b16 %v617
    %v997 = vunpack.c.h.b16 %v617
    %v998 = vunpack.c.l.b16 %v618
    %v999 = vunpack.c.h.b16 %v618
    %v1000 = vunpack.c.l.b16 %v619
    %v1001 = vunpack.c.h.b16 %v619
    %v1002 = vunpack.c.l.b16 %v620
    %v1003 = vunpack.c.h.b16 %v620
    %v1004 = vunpack.c.l.b16 %v621
    %v1005 = vunpack.c.h.b16 %v621
    %v1006 = vpack.c.b16 %v754, %v750
    %v1007 = vpack.c.b16 %v755, %v751
    %v1008 = vpack.c.b16 %v756, %v752
    %v1009 = vpack.c.b16 %v757, %v753
    %v1010 = vpack.c.b16 %v762, %v758
    %v1011 = vpack.c.b16 %v763, %v759
    %v1012 = vpack.c.b16 %v764, %v760
    %v1013 = vpack.c.b16 %v765, %v761
    %v1014 = vpack.c.b16 %v770, %v766
    %v1015 = vpack.c.b16 %v771, %v767
    %v1016 = vpack.c.b16 %v772, %v768
    %v1017 = vpack.c.b16 %v773, %v769
    %v1018 = vpack.c.b16 %v778, %v774
    %v1019 = vpack.c.b16 %v779, %v775
    %v1020 = vpack.c.b16 %v780, %v776
    %v1021 = vpack.c.b16 %v781, %v777
    %v1022 = vpack.c.b16 %v786, %v782
    %v1023 = vpack.c.b16 %v787, %v783
    %v1024 = vpack.c.b16 %v788, %v784
    %v1025 = vpack.c.b16 %v789, %v785
    %v1026 = vpack.c.b16 %v794, %v790
    %v1027 = vpack.c.b16 %v795, %v791
    %v1028 = vpack.c.b16 %v796, %v792
    %v1029 = vpack.c.b16 %v797, %v793
    %v1030 = vpack.c.b16 %v802, %v798
    %v1031 = vpack.c.b16 %v803, %v799
    %v1032 = vpack.c.b16 %v804, %v800
    %v1033 = vpack.c.b16 %v805, %v801
    %v1034 = vpack.c.b16 %v810, %v806
    %v1035 = vpack.c.b16 %v811, %v807
    %v1036 = vpack.c.b16 %v812, %v808
    %v1037 = vpack.c.b16 %v813, %v809
    %v1038 = vpack.c.b16 %v818, %v814
    %v1039 = vpack.c.b16 %v819, %v815
    %v1040 = vpack.c.b16 %v820, %v816
    %v1041 = vpack.c.b16 %v821, %v817
    %v1042 = vpack.c.b16 %v826, %v822
    %v1043 = vpack.c.b16 %v827, %v823
    %v1044 = vpack.c.b16 %v828, %v824
    %v1045 = vpack.c.b16 %v829, %v825
    %v1046 = vpack.c.b16 %v834, %v830
    %v1047 = vpack.c.b16 %v835, %v831
    %v1048 = vpack.c.b16 %v836, %v832
    %v1049 = vpack.c.b16 %v837, %v833
    %v1050 = vpack.c.b16 %v842, %v838
    %v1051 = vpack.c.b16 %v843, %v839
    %v1052 = vpack.c.b16 %v844, %v840
    %v1053 = vpack.c.b16 %v845, %v841
    %v1054 = vpack.c.b16 %v850, %v846
    %v1055 = vpack.c.b16 %v851, %v847
    %v1056 = vpack.c.b16 %v852, %v848
    %v1057 = vpack.c.b16 %v853, %v849
    %v1058 = vpack.c.b16 %v858, %v854
    %v1059 = vpack.c.b16 %v859, %v855
    %v1060 = vpack.c.b16 %v860, %v856
    %v1061 = vpack.c.b16 %v861, %v857
    %v1062 = vpack.c.b16 %v866, %v862
    %v1063 = vpack.c.b16 %v867, %v863
    %v1064 = vpack.c.b16 %v868, %v864
    %v1065 = vpack.c.b16 %v869, %v865
    %v1066 = vpack.c.b16 %v874, %v870
    %v1067 = vpack.c.b16 %v875, %v871
    %v1068 = vpack.c.b16 %v876, %v872
    %v1069 = vpack.c.b16 %v877, %v873
    %v1070 = vpack.c.b16 %v882, %v878
    %v1071 = vpack.c.b16 %v883, %v879
    %v1072 = vpack.c.b16 %v884, %v880
    %v1073 = vpack.c.b16 %v885, %v881
    %v1074 = vpack.c.b16 %v890, %v886
    %v1075 = vpack.c.b16 %v891, %v887
    %v1076 = vpack.c.b16 %v892, %v888
    %v1077 = vpack.c.b16 %v893, %v889
    %v1078 = vpack.c.b16 %v898, %v894
    %v1079 = vpack.c.b16 %v899, %v895
    %v1080 = vpack.c.b16 %v900, %v896
    %v1081 = vpack.c.b16 %v901, %v897
    %v1082 = vpack.c.b16 %v906, %v902
    %v1083 = vpack.c.b16 %v907, %v903
    %v1084 = vpack.c.b16 %v908, %v904
    %v1085 = vpack.c.b16 %v909, %v905
    %v1086 = vpack.c.b16 %v914, %v910
    %v1087 = vpack.c.b16 %v915, %v911
    %v1088 = vpack.c.b16 %v916, %v912
    %v1089 = vpack.c.b16 %v917, %v913
    %v1090 = vpack.c.b16 %v922, %v918
    %v1091 = vpack.c.b16 %v923, %v919
    %v1092 = vpack.c.b16 %v924, %v920
    %v1093 = vpack.c.b16 %v925, %v921
    %v1094 = vpack.c.b16 %v930, %v926
    %v1095 = vpack.c.b16 %v931, %v927
    %v1096 = vpack.c.b16 %v932, %v928
    %v1097 = vpack.c.b16 %v933, %v929
    %v1098 = vpack.c.b16 %v938, %v934
    %v1099 = vpack.c.b16 %v939, %v935
    %v1100 = vpack.c.b16 %v940, %v936
    %v1101 = vpack.c.b16 %v941, %v937
    %v1102 = vpack.c.b16 %v946, %v942
    %v1103 = vpack.c.b16 %v947, %v943
    %v1104 = vpack.c.b16 %v948, %v944
    %v1105 = vpack.c.b16 %v949, %v945
    %v1106 = vpack.c.b16 %v954, %v950
    %v1107 = vpack.c.b16 %v955, %v951
    %v1108 = vpack.c.b16 %v956, %v952
    %v1109 = vpack.c.b16 %v957, %v953
    %v1110 = vpack.c.b16 %v962, %v958
    %v1111 = vpack.c.b16 %v963, %v959
    %v1112 = vpack.c.b16 %v964, %v960
    %v1113 = vpack.c.b16 %v965, %v961
    %v1114 = vpack.c.b16 %v970, %v966
    %v1115 = vpack.c.b16 %v971, %v967
    %v1116 = vpack.c.b16 %v972, %v968
    %v1117 = vpack.c.b16 %v973, %v969
    %v1118 = vpack.c.b16 %v978, %v974
    %v1119 = vpack.c.b16 %v979, %v975
    %v1120 = vpack.c.b16 %v980, %v976
    %v1121 = vpack.c.b16 %v981, %v977
    %v1122 = vpack.c.b16 %v986, %v982
    %v1123 = vpack.c.b16 %v987, %v983
    %v1124 = vpack.c.b16 %v988, %v984
    %v1125 = vpack.c.b16 %v989, %v985
    %v1126 = vpack.c.b16 %v994, %v990
    %v1127 = vpack.c.b16 %v995, %v991
    %v1128 = vpack.c.b16 %v996, %v992
    %v1129 = vpack.c.b16 %v997, %v993
    %v1130 = vpack.c.b16 %v1002, %v998
    %v1131 = vpack.c.b16 %v1003, %v999
    %v1132 = vpack.c.b16 %v1004, %v1000
    %v1133 = vpack.c.b16 %v1005, %v1001
    %1262 = vmatprep.subr.bf16.mxu0 %v1007
    %1263 = vmatpush1.bf16.msra.mxu0 %v1006
    %1264 = vmatprep.subr.bf16.mxu0 %v1011
    %1265 = vmatpush1.bf16.msra.mxu0 %v1010
    %1266 = vmatprep.subr.bf16.mxu0 %v1015
    %1267 = vmatpush1.bf16.msra.mxu0 %v1014
    %1268 = vmatprep.subr.bf16.mxu0 %v1019
    %1269 = vmatpush1.bf16.msra.mxu0 %v1018
    %1270 = vmatprep.subr.bf16.mxu0 %v1023
    %1271 = vmatpush1.bf16.msra.mxu0 %v1022
    %1272 = vmatprep.subr.bf16.mxu0 %v1027
    %1273 = vmatpush1.bf16.msra.mxu0 %v1026
    %1274 = vmatprep.subr.bf16.mxu0 %v1031
    %1275 = vmatpush1.bf16.msra.mxu0 %v1030
    %1276 = vmatprep.subr.bf16.mxu0 %v1035
    %1277 = vmatpush1.bf16.msra.mxu0 %v1034
    %1278 = vmatprep.subr.bf16.mxu0 %v1039
    %1279 = vmatpush1.bf16.msra.mxu0 %v1038
    %1280 = vmatprep.subr.bf16.mxu0 %v1043
    %1281 = vmatpush1.bf16.msra.mxu0 %v1042
    %1282 = vmatprep.subr.bf16.mxu0 %v1047
    %1283 = vmatpush1.bf16.msra.mxu0 %v1046
    %1284 = vmatprep.subr.bf16.mxu0 %v1051
    %1285 = vmatpush1.bf16.msra.mxu0 %v1050
    %1286 = vmatprep.subr.bf16.mxu0 %v1055
    %1287 = vmatpush1.bf16.msra.mxu0 %v1054
    %1288 = vmatprep.subr.bf16.mxu0 %v1059
    %1289 = vmatpush1.bf16.msra.mxu0 %v1058
    %1290 = vmatprep.subr.bf16.mxu0 %v1063
    %1291 = vmatpush1.bf16.msra.mxu0 %v1062
    %1292 = vmatprep.subr.bf16.mxu0 %v1067
    %1293 = vmatpush1.bf16.msra.mxu0 %v1066
    %1294 = vmatprep.mubr.bf16.mxu0 %v491
    %1295 = vmatmul.mubr.bf16.gmra.mrb[0].mxu0 %v490
    %v1296 = vpop.f32.mrb[0].mxu0
    %v1297 = vadd.f32 %v362, %v1296
    %v1298 = vpop.f32.mrb[0].mxu0
    %v1299 = vadd.f32 %v364, %v1298
    %v1300 = vpop.f32.mrb[0].mxu0
    %v1301 = vpop.f32.mrb[0].mxu0
    %1302 = vdwg.mxu0
    %1303 = vmatprep.subr.bf16.mxu0 %v1071
    %1304 = vmatpush1.bf16.msra.mxu0 %v1070
    %1305 = vmatprep.subr.bf16.mxu0 %v1075
    %1306 = vmatpush1.bf16.msra.mxu0 %v1074
    %1307 = vmatprep.subr.bf16.mxu0 %v1079
    %1308 = vmatpush1.bf16.msra.mxu0 %v1078
    %1309 = vmatprep.subr.bf16.mxu0 %v1083
    %1310 = vmatpush1.bf16.msra.mxu0 %v1082
    %1311 = vmatprep.subr.bf16.mxu0 %v1087
    %1312 = vmatpush1.bf16.msra.mxu0 %v1086
    %1313 = vmatprep.subr.bf16.mxu0 %v1091
    %1314 = vmatpush1.bf16.msra.mxu0 %v1090
    %1315 = vmatprep.subr.bf16.mxu0 %v1095
    %1316 = vmatpush1.bf16.msra.mxu0 %v1094
    %1317 = vmatprep.subr.bf16.mxu0 %v1099
    %1318 = vmatpush1.bf16.msra.mxu0 %v1098
    %1319 = vmatprep.subr.bf16.mxu0 %v1103
    %1320 = vmatpush1.bf16.msra.mxu0 %v1102
    %1321 = vmatprep.subr.bf16.mxu0 %v1107
    %1322 = vmatpush1.bf16.msra.mxu0 %v1106
    %1323 = vmatprep.subr.bf16.mxu0 %v1111
    %1324 = vmatpush1.bf16.msra.mxu0 %v1110
    %1325 = vmatprep.subr.bf16.mxu0 %v1115
    %1326 = vmatpush1.bf16.msra.mxu0 %v1114
    %1327 = vmatprep.subr.bf16.mxu0 %v1119
    %1328 = vmatpush1.bf16.msra.mxu0 %v1118
    %1329 = vmatprep.subr.bf16.mxu0 %v1123
    %1330 = vmatpush1.bf16.msra.mxu0 %v1122
    %1331 = vmatprep.subr.bf16.mxu0 %v1127
    %1332 = vmatpush1.bf16.msra.mxu0 %v1126
    %1333 = vmatprep.subr.bf16.mxu0 %v1131
    %1334 = vmatpush1.bf16.msra.mxu0 %v1130
    %1335 = vmatprep.mubr.bf16.mxu0 %v493
    %1336 = vmatmul.mubr.bf16.gmra.mrb[0].mxu0 %v492
    %v1337 = vpop.f32.mrb[0].mxu0
    %v1338 = vadd.f32 %v1297, %v1337
    %v1339 = vpop.f32.mrb[0].mxu0
    %v1340 = vadd.f32 %v1299, %v1339
    %v1341 = vpop.f32.mrb[0].mxu0
    %v1342 = vpop.f32.mrb[0].mxu0
    %1343 = vdwg.mxu0
    %1344 = vmatprep.subr.bf16.mxu0 %v1009
    %1345 = vmatpush1.bf16.msra.mxu0 %v1008
    %1346 = vmatprep.subr.bf16.mxu0 %v1013
    %1347 = vmatpush1.bf16.msra.mxu0 %v1012
    %1348 = vmatprep.subr.bf16.mxu0 %v1017
    %1349 = vmatpush1.bf16.msra.mxu0 %v1016
    %1350 = vmatprep.subr.bf16.mxu0 %v1021
    %1351 = vmatpush1.bf16.msra.mxu0 %v1020
    %1352 = vmatprep.subr.bf16.mxu0 %v1025
    %1353 = vmatpush1.bf16.msra.mxu0 %v1024
    %1354 = vmatprep.subr.bf16.mxu0 %v1029
    %1355 = vmatpush1.bf16.msra.mxu0 %v1028
    %1356 = vmatprep.subr.bf16.mxu0 %v1033
    %1357 = vmatpush1.bf16.msra.mxu0 %v1032
    %1358 = vmatprep.subr.bf16.mxu0 %v1037
    %1359 = vmatpush1.bf16.msra.mxu0 %v1036
    %1360 = vmatprep.subr.bf16.mxu0 %v1041
    %1361 = vmatpush1.bf16.msra.mxu0 %v1040
    %1362 = vmatprep.subr.bf16.mxu0 %v1045
    %1363 = vmatpush1.bf16.msra.mxu0 %v1044
    %1364 = vmatprep.subr.bf16.mxu0 %v1049
    %1365 = vmatpush1.bf16.msra.mxu0 %v1048
    %1366 = vmatprep.subr.bf16.mxu0 %v1053
    %1367 = vmatpush1.bf16.msra.mxu0 %v1052
    %1368 = vmatprep.subr.bf16.mxu0 %v1057
    %1369 = vmatpush1.bf16.msra.mxu0 %v1056
    %1370 = vmatprep.subr.bf16.mxu0 %v1061
    %1371 = vmatpush1.bf16.msra.mxu0 %v1060
    %1372 = vmatprep.subr.bf16.mxu0 %v1065
    %1373 = vmatpush1.bf16.msra.mxu0 %v1064
    %1374 = vmatprep.subr.bf16.mxu0 %v1069
    %1375 = vmatpush1.bf16.msra.mxu0 %v1068
    %1376 = vmatprep.mubr.bf16.mxu0 %v491
    %1377 = vmatmul.mubr.bf16.gmra.mrb[0].mxu0 %v490
    %v1378 = vpop.f32.mrb[0].mxu0
    %v1379 = vadd.f32 %v403, %v1378
    %v1380 = vpop.f32.mrb[0].mxu0
    %v1381 = vadd.f32 %v405, %v1380
    %v1382 = vpop.f32.mrb[0].mxu0
    %v1383 = vpop.f32.mrb[0].mxu0
    %1384 = vdwg.mxu0
    %1385 = vmatprep.subr.bf16.mxu0 %v1073
    %1386 = vmatpush1.bf16.msra.mxu0 %v1072
    %1387 = vmatprep.subr.bf16.mxu0 %v1077
    %1388 = vmatpush1.bf16.msra.mxu0 %v1076
    %1389 = vmatprep.subr.bf16.mxu0 %v1081
    %1390 = vmatpush1.bf16.msra.mxu0 %v1080
    %1391 = vmatprep.subr.bf16.mxu0 %v1085
    %1392 = vmatpush1.bf16.msra.mxu0 %v1084
    %1393 = vmatprep.subr.bf16.mxu0 %v1089
    %1394 = vmatpush1.bf16.msra.mxu0 %v1088
    %1395 = vmatprep.subr.bf16.mxu0 %v1093
    %1396 = vmatpush1.bf16.msra.mxu0 %v1092
    %1397 = vmatprep.subr.bf16.mxu0 %v1097
    %1398 = vmatpush1.bf16.msra.mxu0 %v1096
    %1399 = vmatprep.subr.bf16.mxu0 %v1101
    %1400 = vmatpush1.bf16.msra.mxu0 %v1100
    %1401 = vmatprep.subr.bf16.mxu0 %v1105
    %1402 = vmatpush1.bf16.msra.mxu0 %v1104
    %1403 = vmatprep.subr.bf16.mxu0 %v1109
    %1404 = vmatpush1.bf16.msra.mxu0 %v1108
    %1405 = vmatprep.subr.bf16.mxu0 %v1113
    %1406 = vmatpush1.bf16.msra.mxu0 %v1112
    %1407 = vmatprep.subr.bf16.mxu0 %v1117
    %1408 = vmatpush1.bf16.msra.mxu0 %v1116
    %1409 = vmatprep.subr.bf16.mxu0 %v1121
    %1410 = vmatpush1.bf16.msra.mxu0 %v1120
    %1411 = vmatprep.subr.bf16.mxu0 %v1125
    %1412 = vmatpush1.bf16.msra.mxu0 %v1124
    %1413 = vmatprep.subr.bf16.mxu0 %v1129
    %1414 = vmatpush1.bf16.msra.mxu0 %v1128
    %1415 = vmatprep.subr.bf16.mxu0 %v1133
    %1416 = vmatpush1.bf16.msra.mxu0 %v1132
    %1417 = vmatprep.mubr.bf16.mxu0 %v493
    %1418 = vmatmul.mubr.bf16.gmra.mrb[0].mxu0 %v492
    %v1419 = vpop.f32.mrb[0].mxu0
    %v1420 = vadd.f32 %v1379, %v1419
    %v1421 = vpop.f32.mrb[0].mxu0
    %v1422 = vadd.f32 %v1381, %v1421
    %v1423 = vpop.f32.mrb[0].mxu0
    %v1424 = vpop.f32.mrb[0].mxu0
    %1425 = vdwg.mxu0
    %v1426 = vld [vmem:[%s11] sm:$0xf]
    %v1428 = vlaneseq
    %v1429 = vshrl.u32 %v1428, 7
    %v1430 = vsub.s32 0, %v1429
    %v1431 = vrot.slane %v1426, %v1430
    %v1432 = vlaneseq
    %v1433 = vshrl.u32 %v1432, 7
    %v1434 = vsub.s32 1, %v1433
    %v1435 = vrot.slane %v1426, %v1434
    %v1436 = vlaneseq
    %v1437 = vshrl.u32 %v1436, 7
    %v1438 = vsub.s32 2, %v1437
    %v1439 = vrot.slane %v1426, %v1438
    %v1440 = vlaneseq
    %v1441 = vshrl.u32 %v1440, 7
    %v1442 = vsub.s32 3, %v1441
    %v1443 = vrot.slane %v1426, %v1442
    %v1448 = vadd.f32 %v1338, %v1431
    %v1449 = vadd.f32 %v1340, %v1435
    %v1450 = vadd.f32 %v1420, %v1439
    %v1451 = vadd.f32 %v1422, %v1443
    %1452 = vst [vmem:[#allocation14] sm:$0xff] %v1448
    %1453 = vst [vmem:[#allocation14 + $0x8] sm:$0xff] %v1449
    %1454 = vst [vmem:[#allocation14 + $0x10] sm:$0xff] %v1450
    %1455 = vst [vmem:[#allocation14 + $0x18] sm:$0xff] %v1451
    %v1456 = vpack.c.bf16 %v230, %v230
    %v1457 = vpack.c.bf16 %v231, %v231
    %v1458 = vpack.c.bf16 %v232, %v232
    %v1459 = vld [vmem:[#allocation11] sm:$0xff]
    %v1460 = vld [vmem:[#allocation11 + $0x8] sm:$0xf]
    %v1461 = vld [vmem:[#allocation11 + $0xc] sm:$0xff]
    %v1462 = vld [vmem:[#allocation11 + $0x14] sm:$0xf]
    %v1463 = vld [vmem:[#allocation11 + $0x18] sm:$0xff]
    %v1464 = vld [vmem:[#allocation11 + $0x20] sm:$0xf]
    %v1465 = vld [vmem:[#allocation11 + $0x24] sm:$0xff]
    %v1466 = vld [vmem:[#allocation11 + $0x2c] sm:$0xf]
    %v1467 = vld [vmem:[#allocation11 + $0x30] sm:$0xff]
    %v1468 = vld [vmem:[#allocation11 + $0x38] sm:$0xf]
    %v1469 = vld [vmem:[#allocation11 + $0x3c] sm:$0xff]
    %v1470 = vld [vmem:[#allocation11 + $0x44] sm:$0xf]
    %v1471 = vld [vmem:[#allocation11 + $0x48] sm:$0xff]
    %v1472 = vld [vmem:[#allocation11 + $0x50] sm:$0xf]
    %v1473 = vld [vmem:[#allocation11 + $0x54] sm:$0xff]
    %v1474 = vld [vmem:[#allocation11 + $0x5c] sm:$0xf]
    %v1475 = vld [vmem:[#allocation11 + $0x60] sm:$0xff]
    %v1476 = vld [vmem:[#allocation11 + $0x68] sm:$0xf]
    %v1477 = vld [vmem:[#allocation11 + $0x6c] sm:$0xff]
    %v1478 = vld [vmem:[#allocation11 + $0x74] sm:$0xf]
    %v1479 = vld [vmem:[#allocation11 + $0x78] sm:$0xff]
    %v1480 = vld [vmem:[#allocation11 + $0x80] sm:$0xf]
    %v1481 = vld [vmem:[#allocation11 + $0x84] sm:$0xff]
    %v1482 = vld [vmem:[#allocation11 + $0x8c] sm:$0xf]
    %v1483 = vld [vmem:[#allocation11 + $0x90] sm:$0xff]
    %v1484 = vld [vmem:[#allocation11 + $0x98] sm:$0xf]
    %v1485 = vld [vmem:[#allocation11 + $0x9c] sm:$0xff]
    %v1486 = vld [vmem:[#allocation11 + $0xa4] sm:$0xf]
    %v1487 = vld [vmem:[#allocation11 + $0xa8] sm:$0xff]
    %v1488 = vld [vmem:[#allocation11 + $0xb0] sm:$0xf]
    %v1489 = vld [vmem:[#allocation11 + $0xb4] sm:$0xff]
    %v1490 = vld [vmem:[#allocation11 + $0xbc] sm:$0xf]
    %v1491 = vld [vmem:[#allocation11 + $0xc0] sm:$0xff]
    %v1492 = vld [vmem:[#allocation11 + $0xc8] sm:$0xf]
    %v1493 = vld [vmem:[#allocation11 + $0xcc] sm:$0xff]
    %v1494 = vld [vmem:[#allocation11 + $0xd4] sm:$0xf]
    %v1495 = vld [vmem:[#allocation11 + $0xd8] sm:$0xff]
    %v1496 = vld [vmem:[#allocation11 + $0xe0] sm:$0xf]
    %v1497 = vld [vmem:[#allocation11 + $0xe4] sm:$0xff]
    %v1498 = vld [vmem:[#allocation11 + $0xec] sm:$0xf]
    %v1499 = vld [vmem:[#allocation11 + $0xf0] sm:$0xff]
    %v1500 = vld [vmem:[#allocation11 + $0xf8] sm:$0xf]
    %v1501 = vld [vmem:[#allocation11 + $0xfc] sm:$0xff]
    %v1502 = vld [vmem:[#allocation11 + $0x104] sm:$0xf]
    %v1503 = vld [vmem:[#allocation11 + $0x108] sm:$0xff]
    %v1504 = vld [vmem:[#allocation11 + $0x110] sm:$0xf]
    %v1505 = vld [vmem:[#allocation11 + $0x114] sm:$0xff]
    %v1506 = vld [vmem:[#allocation11 + $0x11c] sm:$0xf]
    %v1507 = vld [vmem:[#allocation11 + $0x120] sm:$0xff]
    %v1508 = vld [vmem:[#allocation11 + $0x128] sm:$0xf]
    %v1509 = vld [vmem:[#allocation11 + $0x12c] sm:$0xff]
    %v1510 = vld [vmem:[#allocation11 + $0x134] sm:$0xf]
    %v1511 = vld [vmem:[#allocation11 + $0x138] sm:$0xff]
    %v1512 = vld [vmem:[#allocation11 + $0x140] sm:$0xf]
    %v1513 = vld [vmem:[#allocation11 + $0x144] sm:$0xff]
    %v1514 = vld [vmem:[#allocation11 + $0x14c] sm:$0xf]
    %v1515 = vld [vmem:[#allocation11 + $0x150] sm:$0xff]
    %v1516 = vld [vmem:[#allocation11 + $0x158] sm:$0xf]
    %v1517 = vld [vmem:[#allocation11 + $0x15c] sm:$0xff]
    %v1518 = vld [vmem:[#allocation11 + $0x164] sm:$0xf]
    %v1519 = vld [vmem:[#allocation11 + $0x168] sm:$0xff]
    %v1520 = vld [vmem:[#allocation11 + $0x170] sm:$0xf]
    %v1521 = vld [vmem:[#allocation11 + $0x174] sm:$0xff]
    %v1522 = vld [vmem:[#allocation11 + $0x17c] sm:$0xf]
    %v1523 = vld [vmem:[#allocation11 + $0x180] sm:$0xff]
    %v1524 = vld [vmem:[#allocation11 + $0x188] sm:$0xf]
    %v1525 = vld [vmem:[#allocation11 + $0x18c] sm:$0xff]
    %v1526 = vld [vmem:[#allocation11 + $0x194] sm:$0xf]
    %v1527 = vld [vmem:[#allocation11 + $0x198] sm:$0xff]
    %v1528 = vld [vmem:[#allocation11 + $0x1a0] sm:$0xf]
    %v1529 = vld [vmem:[#allocation11 + $0x1a4] sm:$0xff]
    %v1530 = vld [vmem:[#allocation11 + $0x1ac] sm:$0xf]
    %v1531 = vld [vmem:[#allocation11 + $0x1b0] sm:$0xff]
    %v1532 = vld [vmem:[#allocation11 + $0x1b8] sm:$0xf]
    %v1533 = vld [vmem:[#allocation11 + $0x1bc] sm:$0xff]
    %v1534 = vld [vmem:[#allocation11 + $0x1c4] sm:$0xf]
    %v1535 = vld [vmem:[#allocation11 + $0x1c8] sm:$0xff]
    %v1536 = vld [vmem:[#allocation11 + $0x1d0] sm:$0xf]
    %v1537 = vld [vmem:[#allocation11 + $0x1d4] sm:$0xff]
    %v1538 = vld [vmem:[#allocation11 + $0x1dc] sm:$0xf]
    %v1539 = vld [vmem:[#allocation11 + $0x1e0] sm:$0xff]
    %v1540 = vld [vmem:[#allocation11 + $0x1e8] sm:$0xf]
    %v1541 = vld [vmem:[#allocation11 + $0x1ec] sm:$0xff]
    %v1542 = vld [vmem:[#allocation11 + $0x1f4] sm:$0xf]
    %v1543 = vld [vmem:[#allocation11 + $0x1f8] sm:$0xff]
    %v1544 = vld [vmem:[#allocation11 + $0x200] sm:$0xf]
    %v1545 = vld [vmem:[#allocation11 + $0x204] sm:$0xff]
    %v1546 = vld [vmem:[#allocation11 + $0x20c] sm:$0xf]
    %v1547 = vld [vmem:[#allocation11 + $0x210] sm:$0xff]
    %v1548 = vld [vmem:[#allocation11 + $0x218] sm:$0xf]
    %v1549 = vld [vmem:[#allocation11 + $0x21c] sm:$0xff]
    %v1550 = vld [vmem:[#allocation11 + $0x224] sm:$0xf]
    %v1551 = vld [vmem:[#allocation11 + $0x228] sm:$0xff]
    %v1552 = vld [vmem:[#allocation11 + $0x230] sm:$0xf]
    %v1553 = vld [vmem:[#allocation11 + $0x234] sm:$0xff]
    %v1554 = vld [vmem:[#allocation11 + $0x23c] sm:$0xf]
    %v1651 = vunpack.c.l.b16 %v1459
    %v1652 = vunpack.c.h.b16 %v1459
    %v1653 = vunpack.c.l.b16 %v1460
    %v1654 = vunpack.c.l.b16 %v1461
    %v1655 = vunpack.c.h.b16 %v1461
    %v1656 = vunpack.c.l.b16 %v1462
    %v1657 = vunpack.c.l.b16 %v1463
    %v1658 = vunpack.c.h.b16 %v1463
    %v1659 = vunpack.c.l.b16 %v1464
    %v1660 = vunpack.c.l.b16 %v1465
    %v1661 = vunpack.c.h.b16 %v1465
    %v1662 = vunpack.c.l.b16 %v1466
    %v1663 = vunpack.c.l.b16 %v1467
    %v1664 = vunpack.c.h.b16 %v1467
    %v1665 = vunpack.c.l.b16 %v1468
    %v1666 = vunpack.c.l.b16 %v1469
    %v1667 = vunpack.c.h.b16 %v1469
    %v1668 = vunpack.c.l.b16 %v1470
    %v1669 = vunpack.c.l.b16 %v1471
    %v1670 = vunpack.c.h.b16 %v1471
    %v1671 = vunpack.c.l.b16 %v1472
    %v1672 = vunpack.c.l.b16 %v1473
    %v1673 = vunpack.c.h.b16 %v1473
    %v1674 = vunpack.c.l.b16 %v1474
    %v1675 = vunpack.c.l.b16 %v1475
    %v1676 = vunpack.c.h.b16 %v1475
    %v1677 = vunpack.c.l.b16 %v1476
    %v1678 = vunpack.c.l.b16 %v1477
    %v1679 = vunpack.c.h.b16 %v1477
    %v1680 = vunpack.c.l.b16 %v1478
    %v1681 = vunpack.c.l.b16 %v1479
    %v1682 = vunpack.c.h.b16 %v1479
    %v1683 = vunpack.c.l.b16 %v1480
    %v1684 = vunpack.c.l.b16 %v1481
    %v1685 = vunpack.c.h.b16 %v1481
    %v1686 = vunpack.c.l.b16 %v1482
    %v1687 = vunpack.c.l.b16 %v1483
    %v1688 = vunpack.c.h.b16 %v1483
    %v1689 = vunpack.c.l.b16 %v1484
    %v1690 = vunpack.c.l.b16 %v1485
    %v1691 = vunpack.c.h.b16 %v1485
    %v1692 = vunpack.c.l.b16 %v1486
    %v1693 = vunpack.c.l.b16 %v1487
    %v1694 = vunpack.c.h.b16 %v1487
    %v1695 = vunpack.c.l.b16 %v1488
    %v1696 = vunpack.c.l.b16 %v1489
    %v1697 = vunpack.c.h.b16 %v1489
    %v1698 = vunpack.c.l.b16 %v1490
    %v1699 = vunpack.c.l.b16 %v1491
    %v1700 = vunpack.c.h.b16 %v1491
    %v1701 = vunpack.c.l.b16 %v1492
    %v1702 = vunpack.c.l.b16 %v1493
    %v1703 = vunpack.c.h.b16 %v1493
    %v1704 = vunpack.c.l.b16 %v1494
    %v1705 = vunpack.c.l.b16 %v1495
    %v1706 = vunpack.c.h.b16 %v1495
    %v1707 = vunpack.c.l.b16 %v1496
    %v1708 = vunpack.c.l.b16 %v1497
    %v1709 = vunpack.c.h.b16 %v1497
    %v1710 = vunpack.c.l.b16 %v1498
    %v1711 = vunpack.c.l.b16 %v1499
    %v1712 = vunpack.c.h.b16 %v1499
    %v1713 = vunpack.c.l.b16 %v1500
    %v1714 = vunpack.c.l.b16 %v1501
    %v1715 = vunpack.c.h.b16 %v1501
    %v1716 = vunpack.c.l.b16 %v1502
    %v1717 = vunpack.c.l.b16 %v1503
    %v1718 = vunpack.c.h.b16 %v1503
    %v1719 = vunpack.c.l.b16 %v1504
    %v1720 = vunpack.c.l.b16 %v1505
    %v1721 = vunpack.c.h.b16 %v1505
    %v1722 = vunpack.c.l.b16 %v1506
    %v1723 = vunpack.c.l.b16 %v1507
    %v1724 = vunpack.c.h.b16 %v1507
    %v1725 = vunpack.c.l.b16 %v1508
    %v1726 = vunpack.c.l.b16 %v1509
    %v1727 = vunpack.c.h.b16 %v1509
    %v1728 = vunpack.c.l.b16 %v1510
    %v1729 = vunpack.c.l.b16 %v1511
    %v1730 = vunpack.c.h.b16 %v1511
    %v1731 = vunpack.c.l.b16 %v1512
    %v1732 = vunpack.c.l.b16 %v1513
    %v1733 = vunpack.c.h.b16 %v1513
    %v1734 = vunpack.c.l.b16 %v1514
    %v1735 = vunpack.c.l.b16 %v1515
    %v1736 = vunpack.c.h.b16 %v1515
    %v1737 = vunpack.c.l.b16 %v1516
    %v1738 = vunpack.c.l.b16 %v1517
    %v1739 = vunpack.c.h.b16 %v1517
    %v1740 = vunpack.c.l.b16 %v1518
    %v1741 = vunpack.c.l.b16 %v1519
    %v1742 = vunpack.c.h.b16 %v1519
    %v1743 = vunpack.c.l.b16 %v1520
    %v1744 = vunpack.c.l.b16 %v1521
    %v1745 = vunpack.c.h.b16 %v1521
    %v1746 = vunpack.c.l.b16 %v1522
    %v1747 = vunpack.c.l.b16 %v1523
    %v1748 = vunpack.c.h.b16 %v1523
    %v1749 = vunpack.c.l.b16 %v1524
    %v1750 = vunpack.c.l.b16 %v1525
    %v1751 = vunpack.c.h.b16 %v1525
    %v1752 = vunpack.c.l.b16 %v1526
    %v1753 = vunpack.c.l.b16 %v1527
    %v1754 = vunpack.c.h.b16 %v1527
    %v1755 = vunpack.c.l.b16 %v1528
    %v1756 = vunpack.c.l.b16 %v1529
    %v1757 = vunpack.c.h.b16 %v1529
    %v1758 = vunpack.c.l.b16 %v1530
    %v1759 = vunpack.c.l.b16 %v1531
    %v1760 = vunpack.c.h.b16 %v1531
    %v1761 = vunpack.c.l.b16 %v1532
    %v1762 = vunpack.c.l.b16 %v1533
    %v1763 = vunpack.c.h.b16 %v1533
    %v1764 = vunpack.c.l.b16 %v1534
    %v1765 = vunpack.c.l.b16 %v1535
    %v1766 = vunpack.c.h.b16 %v1535
    %v1767 = vunpack.c.l.b16 %v1536
    %v1768 = vunpack.c.l.b16 %v1537
    %v1769 = vunpack.c.h.b16 %v1537
    %v1770 = vunpack.c.l.b16 %v1538
    %v1771 = vunpack.c.l.b16 %v1539
    %v1772 = vunpack.c.h.b16 %v1539
    %v1773 = vunpack.c.l.b16 %v1540
    %v1774 = vunpack.c.l.b16 %v1541
    %v1775 = vunpack.c.h.b16 %v1541
    %v1776 = vunpack.c.l.b16 %v1542
    %v1777 = vunpack.c.l.b16 %v1543
    %v1778 = vunpack.c.h.b16 %v1543
    %v1779 = vunpack.c.l.b16 %v1544
    %v1780 = vunpack.c.l.b16 %v1545
    %v1781 = vunpack.c.h.b16 %v1545
    %v1782 = vunpack.c.l.b16 %v1546
    %v1783 = vunpack.c.l.b16 %v1547
    %v1784 = vunpack.c.h.b16 %v1547
    %v1785 = vunpack.c.l.b16 %v1548
    %v1786 = vunpack.c.l.b16 %v1549
    %v1787 = vunpack.c.h.b16 %v1549
    %v1788 = vunpack.c.l.b16 %v1550
    %v1789 = vunpack.c.l.b16 %v1551
    %v1790 = vunpack.c.h.b16 %v1551
    %v1791 = vunpack.c.l.b16 %v1552
    %v1792 = vunpack.c.l.b16 %v1553
    %v1793 = vunpack.c.h.b16 %v1553
    %v1794 = vunpack.c.l.b16 %v1554
    %v1795 = vpack.c.b16 %v1654, %v1651
    %v1796 = vpack.c.b16 %v1655, %v1652
    %v1797 = vpack.c.b16 %v1656, %v1653
    %v1798 = vpack.c.b16 %v1660, %v1657
    %v1799 = vpack.c.b16 %v1661, %v1658
    %v1800 = vpack.c.b16 %v1662, %v1659
    %v1801 = vpack.c.b16 %v1666, %v1663
    %v1802 = vpack.c.b16 %v1667, %v1664
    %v1803 = vpack.c.b16 %v1668, %v1665
    %v1804 = vpack.c.b16 %v1672, %v1669
    %v1805 = vpack.c.b16 %v1673, %v1670
    %v1806 = vpack.c.b16 %v1674, %v1671
    %v1807 = vpack.c.b16 %v1678, %v1675
    %v1808 = vpack.c.b16 %v1679, %v1676
    %v1809 = vpack.c.b16 %v1680, %v1677
    %v1810 = vpack.c.b16 %v1684, %v1681
    %v1811 = vpack.c.b16 %v1685, %v1682
    %v1812 = vpack.c.b16 %v1686, %v1683
    %v1813 = vpack.c.b16 %v1690, %v1687
    %v1814 = vpack.c.b16 %v1691, %v1688
    %v1815 = vpack.c.b16 %v1692, %v1689
    %v1816 = vpack.c.b16 %v1696, %v1693
    %v1817 = vpack.c.b16 %v1697, %v1694
    %v1818 = vpack.c.b16 %v1698, %v1695
    %v1819 = vpack.c.b16 %v1702, %v1699
    %v1820 = vpack.c.b16 %v1703, %v1700
    %v1821 = vpack.c.b16 %v1704, %v1701
    %v1822 = vpack.c.b16 %v1708, %v1705
    %v1823 = vpack.c.b16 %v1709, %v1706
    %v1824 = vpack.c.b16 %v1710, %v1707
    %v1825 = vpack.c.b16 %v1714, %v1711
    %v1826 = vpack.c.b16 %v1715, %v1712
    %v1827 = vpack.c.b16 %v1716, %v1713
    %v1828 = vpack.c.b16 %v1720, %v1717
    %v1829 = vpack.c.b16 %v1721, %v1718
    %v1830 = vpack.c.b16 %v1722, %v1719
    %v1831 = vpack.c.b16 %v1726, %v1723
    %v1832 = vpack.c.b16 %v1727, %v1724
    %v1833 = vpack.c.b16 %v1728, %v1725
    %v1834 = vpack.c.b16 %v1732, %v1729
    %v1835 = vpack.c.b16 %v1733, %v1730
    %v1836 = vpack.c.b16 %v1734, %v1731
    %v1837 = vpack.c.b16 %v1738, %v1735
    %v1838 = vpack.c.b16 %v1739, %v1736
    %v1839 = vpack.c.b16 %v1740, %v1737
    %v1840 = vpack.c.b16 %v1744, %v1741
    %v1841 = vpack.c.b16 %v1745, %v1742
    %v1842 = vpack.c.b16 %v1746, %v1743
    %v1843 = vpack.c.b16 %v1750, %v1747
    %v1844 = vpack.c.b16 %v1751, %v1748
    %v1845 = vpack.c.b16 %v1752, %v1749
    %v1846 = vpack.c.b16 %v1756, %v1753
    %v1847 = vpack.c.b16 %v1757, %v1754
    %v1848 = vpack.c.b16 %v1758, %v1755
    %v1849 = vpack.c.b16 %v1762, %v1759
    %v1850 = vpack.c.b16 %v1763, %v1760
    %v1851 = vpack.c.b16 %v1764, %v1761
    %v1852 = vpack.c.b16 %v1768, %v1765
    %v1853 = vpack.c.b16 %v1769, %v1766
    %v1854 = vpack.c.b16 %v1770, %v1767
    %v1855 = vpack.c.b16 %v1774, %v1771
    %v1856 = vpack.c.b16 %v1775, %v1772
    %v1857 = vpack.c.b16 %v1776, %v1773
    %v1858 = vpack.c.b16 %v1780, %v1777
    %v1859 = vpack.c.b16 %v1781, %v1778
    %v1860 = vpack.c.b16 %v1782, %v1779
    %v1861 = vpack.c.b16 %v1786, %v1783
    %v1862 = vpack.c.b16 %v1787, %v1784
    %v1863 = vpack.c.b16 %v1788, %v1785
    %v1864 = vpack.c.b16 %v1792, %v1789
    %v1865 = vpack.c.b16 %v1793, %v1790
    %v1866 = vpack.c.b16 %v1794, %v1791
    %1939 = vmatprep.subr.bf16.mxu0 %v1796
    %1940 = vmatpush1.bf16.msra.mxu0 %v1795
    %1941 = vmatprep.subr.bf16.mxu0 %v1799
    %1942 = vmatpush1.bf16.msra.mxu0 %v1798
    %1943 = vmatprep.subr.bf16.mxu0 %v1802
    %1944 = vmatpush1.bf16.msra.mxu0 %v1801
    %1945 = vmatprep.subr.bf16.mxu0 %v1805
    %1946 = vmatpush1.bf16.msra.mxu0 %v1804
    %1947 = vmatprep.subr.bf16.mxu0 %v1808
    %1948 = vmatpush1.bf16.msra.mxu0 %v1807
    %1949 = vmatprep.subr.bf16.mxu0 %v1811
    %1950 = vmatpush1.bf16.msra.mxu0 %v1810
    %1951 = vmatprep.subr.bf16.mxu0 %v1814
    %1952 = vmatpush1.bf16.msra.mxu0 %v1813
    %1953 = vmatprep.subr.bf16.mxu0 %v1817
    %1954 = vmatpush1.bf16.msra.mxu0 %v1816
    %1955 = vmatprep.subr.bf16.mxu0 %v1820
    %1956 = vmatpush1.bf16.msra.mxu0 %v1819
    %1957 = vmatprep.subr.bf16.mxu0 %v1823
    %1958 = vmatpush1.bf16.msra.mxu0 %v1822
    %1959 = vmatprep.subr.bf16.mxu0 %v1826
    %1960 = vmatpush1.bf16.msra.mxu0 %v1825
    %1961 = vmatprep.subr.bf16.mxu0 %v1829
    %1962 = vmatpush1.bf16.msra.mxu0 %v1828
    %1963 = vmatprep.subr.bf16.mxu0 %v1832
    %1964 = vmatpush1.bf16.msra.mxu0 %v1831
    %1965 = vmatprep.subr.bf16.mxu0 %v1835
    %1966 = vmatpush1.bf16.msra.mxu0 %v1834
    %1967 = vmatprep.subr.bf16.mxu0 %v1838
    %1968 = vmatpush1.bf16.msra.mxu0 %v1837
    %1969 = vmatprep.subr.bf16.mxu0 %v1841
    %1970 = vmatpush1.bf16.msra.mxu0 %v1840
    %1971 = vmatprep.mubr.bf16.mxu0 %v1457
    %1972 = vmatmul.mubr.bf16.gmra.mrb[0].mxu0 %v1456
    %v1973 = vpop.f32.mrb[0].mxu0
    %v1974 = vadd.f32 %v444, %v1973
    %v1975 = vpop.f32.mrb[0].mxu0
    %v1976 = vadd.f32 %v446, %v1975
    %v1977 = vpop.f32.mrb[0].mxu0
    %v1978 = vpop.f32.mrb[0].mxu0
    %1979 = vdwg.mxu0
    %1980 = vmatprep.subr.bf16.mxu0 %v1844
    %1981 = vmatpush1.bf16.msra.mxu0 %v1843
    %1982 = vmatprep.subr.bf16.mxu0 %v1847
    %1983 = vmatpush1.bf16.msra.mxu0 %v1846
    %1984 = vmatprep.subr.bf16.mxu0 %v1850
    %1985 = vmatpush1.bf16.msra.mxu0 %v1849
    %1986 = vmatprep.subr.bf16.mxu0 %v1853
    %1987 = vmatpush1.bf16.msra.mxu0 %v1852
    %1988 = vmatprep.subr.bf16.mxu0 %v1856
    %1989 = vmatpush1.bf16.msra.mxu0 %v1855
    %1990 = vmatprep.subr.bf16.mxu0 %v1859
    %1991 = vmatpush1.bf16.msra.mxu0 %v1858
    %1992 = vmatprep.subr.bf16.mxu0 %v1862
    %1993 = vmatpush1.bf16.msra.mxu0 %v1861
    %1994 = vmatprep.subr.bf16.mxu0 %v1865
    %1995 = vmatpush1.bf16.msra.mxu0 %v1864
    %1996 = vmatprep.subr.bf16.mxu0 0
    %1997 = vmatpush1.bf16.msra.mxu0 0
    %1998 = vmatprep.subr.bf16.mxu0 0
    %1999 = vmatpush1.bf16.msra.mxu0 0
    %2000 = vmatprep.subr.bf16.mxu0 0
    %2001 = vmatpush1.bf16.msra.mxu0 0
    %2002 = vmatprep.subr.bf16.mxu0 0
    %2003 = vmatpush1.bf16.msra.mxu0 0
    %2004 = vmatprep.subr.bf16.mxu0 0
    %2005 = vmatpush1.bf16.msra.mxu0 0
    %2006 = vmatprep.subr.bf16.mxu0 0
    %2007 = vmatpush1.bf16.msra.mxu0 0
    %2008 = vmatprep.subr.bf16.mxu0 0
    %2009 = vmatpush1.bf16.msra.mxu0 0
    %2010 = vmatprep.subr.bf16.mxu0 0
    %2011 = vmatpush1.bf16.msra.mxu0 0
    %2012 = vmatprep.mubr.bf16.mxu0 0
    %2013 = vmatmul.mubr.bf16.gmra.mrb[0].mxu0 %v1458
    %v2014 = vpop.f32.mrb[0].mxu0
    %v2015 = vadd.f32 %v1974, %v2014
    %v2016 = vpop.f32.mrb[0].mxu0
    %v2017 = vadd.f32 %v1976, %v2016
    %v2018 = vpop.f32.mrb[0].mxu0
    %v2019 = vpop.f32.mrb[0].mxu0
    %2020 = vdwg.mxu0
    %2021 = vmatprep.subr.bf16.mxu0 0
    %2022 = vmatpush1.bf16.msra.mxu0 %v1797
    %2023 = vmatprep.subr.bf16.mxu0 0
    %2024 = vmatpush1.bf16.msra.mxu0 %v1800
    %2025 = vmatprep.subr.bf16.mxu0 0
    %2026 = vmatpush1.bf16.msra.mxu0 %v1803
    %2027 = vmatprep.subr.bf16.mxu0 0
    %2028 = vmatpush1.bf16.msra.mxu0 %v1806
    %2029 = vmatprep.subr.bf16.mxu0 0
    %2030 = vmatpush1.bf16.msra.mxu0 %v1809
    %2031 = vmatprep.subr.bf16.mxu0 0
    %2032 = vmatpush1.bf16.msra.mxu0 %v1812
    %2033 = vmatprep.subr.bf16.mxu0 0
    %2034 = vmatpush1.bf16.msra.mxu0 %v1815
    %2035 = vmatprep.subr.bf16.mxu0 0
    %2036 = vmatpush1.bf16.msra.mxu0 %v1818
    %2037 = vmatprep.subr.bf16.mxu0 0
    %2038 = vmatpush1.bf16.msra.mxu0 %v1821
    %2039 = vmatprep.subr.bf16.mxu0 0
    %2040 = vmatpush1.bf16.msra.mxu0 %v1824
    %2041 = vmatprep.subr.bf16.mxu0 0
    %2042 = vmatpush1.bf16.msra.mxu0 %v1827
    %2043 = vmatprep.subr.bf16.mxu0 0
    %2044 = vmatpush1.bf16.msra.mxu0 %v1830
    %2045 = vmatprep.subr.bf16.mxu0 0
    %2046 = vmatpush1.bf16.msra.mxu0 %v1833
    %2047 = vmatprep.subr.bf16.mxu0 0
    %2048 = vmatpush1.bf16.msra.mxu0 %v1836
    %2049 = vmatprep.subr.bf16.mxu0 0
    %2050 = vmatpush1.bf16.msra.mxu0 %v1839
    %2051 = vmatprep.subr.bf16.mxu0 0
    %2052 = vmatpush1.bf16.msra.mxu0 %v1842
    %2053 = vmatprep.mubr.bf16.mxu0 %v1457
    %2054 = vmatmul.mubr.bf16.gmra.mrb[0].mxu0 %v1456
    %v2055 = vpop.f32.mrb[0].mxu0
    %v2056 = vadd.f32 %v485, %v2055
    %v2057 = vpop.f32.mrb[0].mxu0
    %v2058 = vpop.f32.mrb[0].mxu0
    %v2059 = vpop.f32.mrb[0].mxu0
    %2060 = vdwg.mxu0
    %2061 = vmatprep.subr.bf16.mxu0 0
    %2062 = vmatpush1.bf16.msra.mxu0 %v1845
    %2063 = vmatprep.subr.bf16.mxu0 0
    %2064 = vmatpush1.bf16.msra.mxu0 %v1848
    %2065 = vmatprep.subr.bf16.mxu0 0
    %2066 = vmatpush1.bf16.msra.mxu0 %v1851
    %2067 = vmatprep.subr.bf16.mxu0 0
    %2068 = vmatpush1.bf16.msra.mxu0 %v1854
    %2069 = vmatprep.subr.bf16.mxu0 0
    %2070 = vmatpush1.bf16.msra.mxu0 %v1857
    %2071 = vmatprep.subr.bf16.mxu0 0
    %2072 = vmatpush1.bf16.msra.mxu0 %v1860
    %2073 = vmatprep.subr.bf16.mxu0 0
    %2074 = vmatpush1.bf16.msra.mxu0 %v1863
    %2075 = vmatprep.subr.bf16.mxu0 0
    %2076 = vmatpush1.bf16.msra.mxu0 %v1866
    %2077 = vmatprep.subr.bf16.mxu0 0
    %2078 = vmatpush1.bf16.msra.mxu0 0
    %2079 = vmatprep.subr.bf16.mxu0 0
    %2080 = vmatpush1.bf16.msra.mxu0 0
    %2081 = vmatprep.subr.bf16.mxu0 0
    %2082 = vmatpush1.bf16.msra.mxu0 0
    %2083 = vmatprep.subr.bf16.mxu0 0
    %2084 = vmatpush1.bf16.msra.mxu0 0
    %2085 = vmatprep.subr.bf16.mxu0 0
    %2086 = vmatpush1.bf16.msra.mxu0 0
    %2087 = vmatprep.subr.bf16.mxu0 0
    %2088 = vmatpush1.bf16.msra.mxu0 0
    %2089 = vmatprep.subr.bf16.mxu0 0
    %2090 = vmatpush1.bf16.msra.mxu0 0
    %2091 = vmatprep.subr.bf16.mxu0 0
    %2092 = vmatpush1.bf16.msra.mxu0 0
    %2093 = vmatprep.mubr.bf16.mxu0 0
    %2094 = vmatmul.mubr.bf16.gmra.mrb[0].mxu0 %v1458
    %v2095 = vpop.f32.mrb[0].mxu0
    %v2096 = vadd.f32 %v2056, %v2095
    %v2097 = vpop.f32.mrb[0].mxu0
    %v2098 = vpop.f32.mrb[0].mxu0
    %v2099 = vpop.f32.mrb[0].mxu0
    %2100 = vdwg.mxu0
    %v2101 = vld [vmem:[%s12] sm:$0x7]
    %v2103 = vlaneseq
    %v2104 = vshrl.u32 %v2103, 7
    %v2105 = vsub.s32 0, %v2104
    %v2106 = vrot.slane %v2101, %v2105
    %v2107 = vlaneseq
    %v2108 = vshrl.u32 %v2107, 7
    %v2109 = vsub.s32 1, %v2108
    %v2110 = vrot.slane %v2101, %v2109
    %v2111 = vlaneseq
    %v2112 = vshrl.u32 %v2111, 7
    %v2113 = vsub.s32 2, %v2112
    %v2114 = vrot.slane %v2101, %v2113
    %v2118 = vadd.f32 %v2015, %v2106
    %v2119 = vadd.f32 %v2017, %v2110
    %v2120 = vadd.f32 %v2096, %v2114
    %2121 = vst [vmem:[#allocation15] sm:$0xff] %v2118
    %2122 = vst [vmem:[#allocation15 + $0x8] sm:$0xff] %v2119
    %2123 = vst [vmem:[#allocation15 + $0x10] sm:$0xff] %v2120
    // Predicated region
    $region82: #{tpu_custom_call.1} parent=1 // pred_check
      _
    $region83: #{tpu_custom_call.1} parent=1 // pred_check_branch
      %2125 = sbr.rel (0) target = $region85
    $region84: #{tpu_custom_call.1} parent=1 // pred_region
      %s2127 = ssub.s32 512, 512
      %2128 = vsyncadd [#allocation4], %s2127
      %s2130 = sshll.u32 [#allocation14], 4
      %s2131 = int_to_ptr.vmem [resolvable:$true] %s2130
      %2133 = dma.vmem_to_hbm [thread:$0]  %s2131, 512, %s13, [#allocation4]
    $region85: #{tpu_custom_call.1} parent=1 // pred_fallthru
      _
    // Predicated region
    $region86: #{tpu_custom_call.1} parent=1 // pred_check
      _
    $region87: #{tpu_custom_call.1} parent=1 // pred_check_branch
      %2135 = sbr.rel (0) target = $region89
    $region88: #{tpu_custom_call.1} parent=1 // pred_region
      %s2137 = ssub.s32 384, 384
      %2138 = vsyncadd [#allocation16], %s2137
      %s2140 = sshll.u32 [#allocation15], 4
      %s2141 = int_to_ptr.vmem [resolvable:$true] %s2140
      %2143 = dma.vmem_to_hbm [thread:$0]  %s2141, 384, %s14, [#allocation16]
    $region89: #{tpu_custom_call.1} parent=1 // pred_fallthru
      _
    // Predicated region
    $region90: #{tpu_custom_call.1} parent=1 // pred_check
      _
    $region91: #{tpu_custom_call.1} parent=1 // pred_check_branch
      %2145 = sbr.rel (0) target = $region93
    $region92: #{tpu_custom_call.1} parent=1 // pred_region
      %2146 = dma.done [#allocation4], 512
    $region93: #{tpu_custom_call.1} parent=1 // pred_fallthru
      _
    // Predicated region
    $region94: #{tpu_custom_call.1} parent=1 // pred_check
      _
    $region95: #{tpu_custom_call.1} parent=1 // pred_check_branch
      %2148 = sbr.rel (0) target = $region97
    $region96: #{tpu_custom_call.1} parent=1 // pred_region
      %2149 = dma.done [#allocation16], 384
    $region97: #{tpu_custom_call.1} parent=1 // pred_fallthru
      _
    %2150 = vsyncpa [#allocation3], 1
    %2151 = vsyncpa [#allocation6], 1
    %2152 = vsyncpa [#allocation9], 1
    %2153 = vsyncpa [#allocation12], 1
    %2154 = vsyncpa [#allocation4], 1
    %2155 = vsyncpa [#allocation16], 1

</llo_original>
